<compile_context>
chip_gen: v6e
topology: v6e:2x2x1
jax: 0.10.0
libtpu: 0.0.40
codegen_flags: <defaults>
</compile_context>

<pallas_src>
import numpy as np
import jax
import jax.numpy as jnp
from jax.experimental import pallas as pl
from jax.experimental.pallas import tpu as pltpu

_EPS = 1e-5            # PyTorch LayerNorm default eps
_MAT_PLANES = 9
_MAT_ROWS = 64
_MAT_COLS = 32
_VEC_ROWS = 64


# ----------------------------- kernel helpers ------------------------------- #

def _layer_norm(v, g, b):
    # Feature-major LN: normalize over axis 0 (features / sublanes).
    # Two-pass form (centered squares) matches PyTorch and cannot produce a
    # negative variance.
    mu = jnp.mean(v, axis=0, keepdims=True)          # (1, TB)
    xc = v - mu
    var = jnp.mean(xc * xc, axis=0, keepdims=True)   # (1, TB)
    return xc * jax.lax.rsqrt(var + _EPS) * g + b


# --------------------------------- kernel ----------------------------------- #

def make_kernel(input_size, hidden_sizes, n_qubits):
    dims = [input_size] + list(hidden_sizes)
    dim = 1 << n_qubits
    f32 = jnp.float32

    def kernel(x_ref, mats_ref, vecs_ref, o_ref):
        h = x_ref[...]                                # (d_in0, TB), batch on lanes

        # ---- three ResidualMLPBlocks ----
        # TODO(synk): dropout is implemented as identity (inference semantics only).
        for blk in range(3):
            d_in, d_out = dims[blk], dims[blk + 1]
            base = 8 * blk
            # fused [fc1 ; downsample] matmul: one MXU dispatch, split on sublanes
            w_f = mats_ref[blk, :2 * d_out, :d_in]            # (2*d_out, d_in)
            b_f = vecs_ref[:2 * d_out, base:base + 1]         # (2*d_out, 1)
            z = jnp.dot(w_f, h, preferred_element_type=f32) + b_f
            z1 = z[:d_out]                    # fc1 path
            zd = z[d_out:2 * d_out]           # downsample path
            out = jax.nn.relu(_layer_norm(
                z1,
                vecs_ref[:d_out, base + 1:base + 2],
                vecs_ref[:d_out, base + 2:base + 3]))
            identity = _layer_norm(
                zd,
                vecs_ref[:d_out, base + 6:base + 7],
                vecs_ref[:d_out, base + 7:base + 8])
            w2 = mats_ref[3 + blk, :d_out, :d_out]
            out = _layer_norm(
                jnp.dot(w2, out, preferred_element_type=f32)
                + vecs_ref[:d_out, base + 3:base + 4],
                vecs_ref[:d_out, base + 4:base + 5],
                vecs_ref[:d_out, base + 5:base + 6])
            h = jax.nn.relu(out + identity)

        # ---- bn_q + quantum_fc_input ----
        bnq_g = vecs_ref[:n_qubits, 24:25]
        bnq_b = vecs_ref[:n_qubits, 25:26]
        qfc_b = vecs_ref[:n_qubits, 26:27]
        h = _layer_norm(h, bnq_g, bnq_b)
        w_qfc = mats_ref[6, :n_qubits, :dims[3]]
        theta = jnp.tanh(jnp.dot(w_qfc, h, preferred_element_type=f32)
                         + qfc_b) * np.pi                      # (n_qubits, TB)

        # ---- quantum circuit (analytic statevector, real/imag split) ----
        # per-qubit state after RZ(th) RY(th) |0>:
        #   [cos(th/2) e^{-i th/2}, sin(th/2) e^{+i th/2}]
        half = 0.5 * theta
        c = jnp.cos(half)
        s = jnp.sin(half)
        q_r0 = c * c
        q_i0 = -(c * s)
        q_r1 = s * c
        q_i1 = s * s

        def qubit_amp(i):
            # precomputed 0/1 basis-bit column (big-endian PennyLane wires)
            bit = vecs_ref[:dim, 29 + i:30 + i]                # (dim, 1)
            nbit = 1.0 - bit
            sr = q_r0[i:i + 1, :] * nbit + q_r1[i:i + 1, :] * bit   # (dim, TB)
            si = q_i0[i:i + 1, :] * nbit + q_i1[i:i + 1, :] * bit
            return sr, si

        # initialize from qubit 0 directly (skip multiply-by-(1+0i))
        psi_r, psi_i = qubit_amp(0)
        for i in range(1, n_qubits):
            sr, si = qubit_amp(i)
            psi_r, psi_i = psi_r * sr - psi_i * si, psi_r * si + psi_i * sr

        # entangler unitary as ONE block-matrix matmul:
        #   [out_r; out_i] = [[Ur, -Ui], [Ui, Ur]] @ [psi_r; psi_i]
        psi = jnp.concatenate([psi_r, psi_i], axis=0)          # (2*dim, TB)
        m_u = mats_ref[7, :2 * dim, :2 * dim]
        oc = jnp.dot(m_u, psi, preferred_element_type=f32)
        out_r = oc[:dim]
        out_i = oc[dim:2 * dim]
        probs = out_r * out_r + out_i * out_i                  # (dim, TB)

        # <Z_i>: small matmul, lane-dense output (N = TB)
        z_sign = mats_ref[8, :n_qubits, :dim]
        expvals = jnp.dot(z_sign, probs, preferred_element_type=f32)   # (n_qubits, TB)

        # ---- second bn_q (same params), final linear (VPU), sigmoid ----
        h2 = _layer_norm(expvals, bnq_g, bnq_b)
        w_fin = vecs_ref[:n_qubits, 27:28]                     # (n_qubits, 1)
        b_fin = vecs_ref[0:1, 28:29]                           # (1, 1)
        logit = jnp.sum(w_fin * h2, axis=0, keepdims=True) + b_fin     # (1, TB)
        o_ref[...] = 1.0 / (1.0 + jnp.exp(-logit))

    return kernel


# ------------------------------ wrapper / glue ------------------------------- #

def _round_up(a, m):
    return ((a + m - 1) // m) * m


def hybrid_qcnn_forward(x, mats, vecs, *, input_size, hidden_sizes, n_qubits,
                        batch_block=1024):
    B, F = x.shape
    assert F == input_size
    dims = [input_size] + list(hidden_sizes)
    dim = 1 << n_qubits

    # batch lives on the LANE axis → tile is a multiple of 128
    B128 = _round_up(B, 128)
    TB = min(_round_up(batch_block, 128), B128)
    # v7x: ensure >= 2 grid steps when the batch allows so both TensorCores
    # get work via the 'parallel' axis (no effect on v5e/v6e single-TC chips).
    if B128 // TB < 2 and B128 >= 256:
        TB = _round_up(B128 // 2, 128)
    B_pad = _round_up(B128, TB)
    grid = (B_pad // TB,)

    # feature-major input slab: (F, B_pad) — wrapper-side layout plumbing
    xt = jnp.pad(x, ((0, B_pad - B), (0, 0))).T

    kernel = make_kernel(input_size, hidden_sizes, n_qubits)

    # advisory cost estimate so XLA can schedule around this small call
    macs = 0
    for blk in range(3):
        d_in, d_out = dims[blk], dims[blk + 1]
        macs += 2 * d_out * d_in + d_out * d_out
    macs += n_qubits * dims[3] + (2 * dim) * (2 * dim) + n_qubits * dim + n_qubits
    elemwise = 10 * (sum(dims[1:]) + 4 * dim + 4 * n_qubits)
    cost = pl.CostEstimate(
        flops=int(B_pad * (2 * macs + elemwise)),
        transcendentals=int(B_pad * (3 * n_qubits + 11)),
        bytes_accessed=int(xt.size * 4 + mats.size * 4 + vecs.size * 4 + B_pad * 4),
    )

    out = pl.pallas_call(
        kernel,
        out_shape=jax.ShapeDtypeStruct((1, B_pad), jnp.float32),
        grid=grid,
        in_specs=[
            pl.BlockSpec((F, TB), lambda i: (0, i)),
            pl.BlockSpec(mats.shape, lambda i: (0, 0, 0)),   # resident weights
            pl.BlockSpec(vecs.shape, lambda i: (0, 0)),      # resident vectors
        ],
        out_specs=pl.BlockSpec((1, TB), lambda i: (0, i)),   # lane-dense output
        compiler_params=pltpu.CompilerParams(
            dimension_semantics=("parallel",)),
        cost_estimate=cost,
    )(xt, mats, vecs)
    return out[0, :B][:, None]


# -------------------------- parameter construction --------------------------- #

def _basic_entangler_unitary(weights):
    """BasicEntanglerLayers (RX rotations + CNOT ring) unitary, big-endian wires."""
    n_layers, n = weights.shape
    dim = 2 ** n

    def rx(t):
        c, s = np.cos(t / 2.0), np.sin(t / 2.0)
        return np.array([[c, -1j * s], [-1j * s, c]], dtype=np.complex128)

    def kron_all(mats):
        out = np.array([[1.0 + 0j]], dtype=np.complex128)
        for m in mats:
            out = np.kron(out, m)
        return out

    def cnot(control, target):
        M = np.zeros((dim, dim), dtype=np.complex128)
        for k in range(dim):
            cbit = (k >> (n - 1 - control)) & 1
            j = k ^ (1 << (n - 1 - target)) if cbit else k
            M[j, k] = 1.0
        return M

    U = np.eye(dim, dtype=np.complex128)
    for l in range(n_layers):
        layer = kron_all([rx(weights[l, i]) for i in range(n)])
        if n == 2:
            layer = cnot(0, 1) @ layer
        else:
            for i in range(n):
                layer = cnot(i, (i + 1) % n) @ layer
        U = layer @ U
    return U


def _linear_init(key, fan_in, fan_out):
    kw, kb = jax.random.split(key)
    bound = 1.0 / np.sqrt(fan_in)
    w = np.asarray(jax.random.uniform(kw, (fan_out, fan_in), jnp.float32,
                                      -bound, bound))        # (out, in) like torch
    b = np.asarray(jax.random.uniform(kb, (fan_out,), jnp.float32,
                                      -bound, bound))
    return w, b


def build_packed_params(key, input_size, hidden_sizes, n_qubits, n_layers):
    dims = [input_size] + list(hidden_sizes)
    dim = 1 << n_qubits
    n_vec_cols = 29 + n_qubits
    assert hidden_sizes[2] == n_qubits        # required for bn_q(x) to be valid
    assert 2 * max(dims[1:]) <= _MAT_ROWS and 2 * dim <= _MAT_ROWS
    assert max(dims) <= _MAT_COLS and 2 * dim <= _MAT_COLS
    assert dim <= _VEC_ROWS and 2 * max(dims[1:]) <= _VEC_ROWS

    mats = np.zeros((_MAT_PLANES, _MAT_ROWS, _MAT_COLS), np.float32)
    vecs = np.zeros((_VEC_ROWS, n_vec_cols), np.float32)

    keys = list(jax.random.split(key, 12))
    kiter = iter(keys)

    for blk in range(3):
        d_in, d_out = dims[blk], dims[blk + 1]
        fc1_w, fc1_b = _linear_init(next(kiter), d_in, d_out)
        fc2_w, fc2_b = _linear_init(next(kiter), d_out, d_out)
        ds_w, ds_b = _linear_init(next(kiter), d_in, d_out)
        base = 8 * blk
        mats[blk, :d_out, :d_in] = fc1_w                 # fused [fc1 ; downsample]
        mats[blk, d_out:2 * d_out, :d_in] = ds_w
        mats[3 + blk, :d_out, :d_out] = fc2_w
        vecs[:d_out, base] = fc1_b
        vecs[d_out:2 * d_out, base] = ds_b
        vecs[:d_out, base + 1] = 1.0                     # ln1 gamma
        vecs[:d_out, base + 2] = 0.0                     # ln1 beta
        vecs[:d_out, base + 3] = fc2_b
        vecs[:d_out, base + 4] = 1.0                     # ln2 gamma
        vecs[:d_out, base + 5] = 0.0                     # ln2 beta
        vecs[:d_out, base + 6] = 1.0                     # downsample LN gamma
        vecs[:d_out, base + 7] = 0.0                     # downsample LN beta

    # bn_q (LayerNorm(n_qubits)) — used twice in forward with the same params
    vecs[:n_qubits, 24] = 1.0
    vecs[:n_qubits, 25] = 0.0

    # quantum_fc_input: Linear(hidden_sizes[2], n_qubits)
    qfc_w, qfc_b = _linear_init(next(kiter), hidden_sizes[2], n_qubits)
    mats[6, :n_qubits, :hidden_sizes[2]] = qfc_w
    vecs[:n_qubits, 26] = qfc_b

    # quantum layer trainable weights ~ N(0, 0.01), baked into the unitary U,
    # stored as the real block matrix [[Ur, -Ui], [Ui, Ur]]
    qw = np.asarray(jax.random.normal(next(kiter), (n_layers, n_qubits)) * 0.01,
                    dtype=np.float64)
    U = _basic_entangler_unitary(qw)
    u_r = U.real.astype(np.float32)
    u_i = U.imag.astype(np.float32)
    mats[7, :dim, :dim] = u_r
    mats[7, :dim, dim:2 * dim] = -u_i
    mats[7, dim:2 * dim, :dim] = u_i
    mats[7, dim:2 * dim, dim:2 * dim] = u_r

    # PauliZ sign table: sign[i, k] = (-1)^{bit_i(k)} (big-endian wires)
    ks = np.arange(dim)[None, :]
    shifts = (n_qubits - 1 - np.arange(n_qubits))[:, None]
    bits = (ks >> shifts) & 1                            # (n_qubits, dim)
    mats[8, :n_qubits, :dim] = 1.0 - 2.0 * bits

    # final_fc: Linear(n_qubits, 1) — applied on the VPU inside the kernel
    fin_w, fin_b = _linear_init(next(kiter), n_qubits, 1)
    vecs[:n_qubits, 27] = fin_w[0]
    vecs[0, 28] = fin_b[0]

    # basis-bit table columns (one per qubit) for the product-state loop
    vecs[:dim, 29:29 + n_qubits] = bits.T.astype(np.float32)

    return jnp.asarray(mats), jnp.asarray(vecs)


# ---------------------------------- main ------------------------------------- #

if __name__ == "__main__":
    B, input_size = 8, 16
    hidden_sizes = [32, 16, 4]   # last == n_qubits so bn_q(LayerNorm(n_qubits)) is valid
    n_qubits, n_layers = 4, 2

    key = jax.random.PRNGKey(0)
    kx, kp = jax.random.split(key)
    x = jax.random.normal(kx, (B, input_size), jnp.float32)
    mats, vecs = build_packed_params(kp, input_size, hidden_sizes, n_qubits, n_layers)

    y = hybrid_qcnn_forward(x, mats, vecs,
                            input_size=input_size,
                            hidden_sizes=hidden_sizes,
                            n_qubits=n_qubits)
    y = jax.block_until_ready(y)

    assert y.shape == (B, 1)
    assert bool(jnp.all(jnp.isfinite(y)))
    assert bool(jnp.all((y >= 0.0) & (y <= 1.0)))
    print("KERNEL_OK")
</pallas_src>

<mosaic_0001>
module attributes {stable_mosaic.version = 11 : i64} {
  func.func @kernel(%arg0: i32, %arg1: memref<16x128xf32, #tpu.memory_space<vmem>>, %arg2: memref<9x64x32xf32, #tpu.memory_space<vmem>>, %arg3: memref<64x33xf32, #tpu.memory_space<vmem>>, %arg4: memref<1x128xf32, #tpu.memory_space<vmem>>) attributes {dimension_semantics = [#tpu.dimension_semantics<parallel>], iteration_bounds = array<i64: 1>, scalar_prefetch = 0 : i64, scratch_operands = 0 : i64, tpu.core_type = #tpu.core_type<tc>, window_params = [{transform_indices = @transform_0, window_bounds = array<i64: 16, 128>}, {pipeline_mode = #tpu.pipeline_mode<synchronous>, transform_indices = @transform_1, window_bounds = array<i64: 9, 64, 32>}, {pipeline_mode = #tpu.pipeline_mode<synchronous>, transform_indices = @transform_2, window_bounds = array<i64: 64, 33>}, {transform_indices = @transform_3, window_bounds = array<i64: 1, 128>}]} {
    %c0 = arith.constant 0 : index
    %c0_0 = arith.constant 0 : index
    %0 = vector.load %arg1[%c0, %c0_0] : memref<16x128xf32, #tpu.memory_space<vmem>>, vector<16x128xf32>
    %c0_1 = arith.constant 0 : index
    %c0_2 = arith.constant 0 : index
    %c0_3 = arith.constant 0 : index
    %1 = vector.load %arg2[%c0_1, %c0_2, %c0_3] : memref<9x64x32xf32, #tpu.memory_space<vmem>>, vector<1x64x16xf32>
    %2 = vector.shape_cast %1 : vector<1x64x16xf32> to vector<64x16xf32>
    %c0_4 = arith.constant 0 : index
    %c0_5 = arith.constant 0 : index
    %3 = vector.load %arg3[%c0_4, %c0_5] : memref<64x33xf32, #tpu.memory_space<vmem>>, vector<64x1xf32>
    %cst = arith.constant dense<0.000000e+00> : vector<64x128xf32>
    %4 = tpu.matmul %2, %0, %cst {dimension_numbers = #tpu.dot_dimension_numbers<[1], [0], [0], [1], [0, 0, 1, 1], [], []>} : vector<64x16xf32>, vector<16x128xf32>, vector<64x128xf32> -> vector<64x128xf32>
    %5 = vector.broadcast %3 : vector<64x1xf32> to vector<64x128xf32>
    %6 = arith.addf %4, %5 : vector<64x128xf32>
    %7 = vector.extract_strided_slice %6 {offsets = [0, 0], sizes = [32, 128], strides = [1, 1]} : vector<64x128xf32> to vector<32x128xf32>
    %8 = vector.extract_strided_slice %6 {offsets = [32, 0], sizes = [32, 128], strides = [1, 1]} : vector<64x128xf32> to vector<32x128xf32>
    %c0_6 = arith.constant 0 : index
    %c1 = arith.constant 1 : index
    %9 = vector.load %arg3[%c0_6, %c1] : memref<64x33xf32, #tpu.memory_space<vmem>>, vector<32x1xf32>
    %c0_7 = arith.constant 0 : index
    %c2 = arith.constant 2 : index
    %10 = vector.load %arg3[%c0_7, %c2] : memref<64x33xf32, #tpu.memory_space<vmem>>, vector<32x1xf32>
    %cst_8 = arith.constant dense<0.000000e+00> : vector<128xf32>
    %11 = vector.multi_reduction <add>, %7, %cst_8 [0] : vector<32x128xf32> to vector<128xf32>
    %12 = vector.shape_cast %11 : vector<128xf32> to vector<1x128xf32>
    %cst_9 = arith.constant 3.200000e+01 : f32
    %13 = vector.broadcast %cst_9 : f32 to vector<1x128xf32>
    %14 = arith.divf %12, %13 : vector<1x128xf32>
    %15 = vector.broadcast %14 : vector<1x128xf32> to vector<32x128xf32>
    %16 = arith.subf %7, %15 : vector<32x128xf32>
    %17 = arith.mulf %16, %16 : vector<32x128xf32>
    %cst_10 = arith.constant dense<0.000000e+00> : vector<128xf32>
    %18 = vector.multi_reduction <add>, %17, %cst_10 [0] : vector<32x128xf32> to vector<128xf32>
    %19 = vector.shape_cast %18 : vector<128xf32> to vector<1x128xf32>
    %cst_11 = arith.constant 3.200000e+01 : f32
    %20 = vector.broadcast %cst_11 : f32 to vector<1x128xf32>
    %21 = arith.divf %19, %20 : vector<1x128xf32>
    %cst_12 = arith.constant 9.99999974E-6 : f32
    %22 = vector.broadcast %cst_12 : f32 to vector<1x128xf32>
    %23 = arith.addf %21, %22 : vector<1x128xf32>
    %24 = math.rsqrt %23 : vector<1x128xf32>
    %25 = vector.broadcast %24 : vector<1x128xf32> to vector<32x128xf32>
    %26 = arith.mulf %16, %25 : vector<32x128xf32>
    %27 = vector.broadcast %9 : vector<32x1xf32> to vector<32x128xf32>
    %28 = arith.mulf %26, %27 : vector<32x128xf32>
    %29 = vector.broadcast %10 : vector<32x1xf32> to vector<32x128xf32>
    %30 = arith.addf %28, %29 : vector<32x128xf32>
    %cst_13 = arith.constant 0.000000e+00 : f32
    %31 = vector.broadcast %cst_13 : f32 to vector<32x128xf32>
    %32 = arith.maximumf %30, %31 : vector<32x128xf32>
    %c0_14 = arith.constant 0 : index
    %c6 = arith.constant 6 : index
    %33 = vector.load %arg3[%c0_14, %c6] : memref<64x33xf32, #tpu.memory_space<vmem>>, vector<32x1xf32>
    %c0_15 = arith.constant 0 : index
    %c7 = arith.constant 7 : index
    %34 = vector.load %arg3[%c0_15, %c7] : memref<64x33xf32, #tpu.memory_space<vmem>>, vector<32x1xf32>
    %cst_16 = arith.constant dense<0.000000e+00> : vector<128xf32>
    %35 = vector.multi_reduction <add>, %8, %cst_16 [0] : vector<32x128xf32> to vector<128xf32>
    %36 = vector.shape_cast %35 : vector<128xf32> to vector<1x128xf32>
    %cst_17 = arith.constant 3.200000e+01 : f32
    %37 = vector.broadcast %cst_17 : f32 to vector<1x128xf32>
    %38 = arith.divf %36, %37 : vector<1x128xf32>
    %39 = vector.broadcast %38 : vector<1x128xf32> to vector<32x128xf32>
    %40 = arith.subf %8, %39 : vector<32x128xf32>
    %41 = arith.mulf %40, %40 : vector<32x128xf32>
    %cst_18 = arith.constant dense<0.000000e+00> : vector<128xf32>
    %42 = vector.multi_reduction <add>, %41, %cst_18 [0] : vector<32x128xf32> to vector<128xf32>
    %43 = vector.shape_cast %42 : vector<128xf32> to vector<1x128xf32>
    %cst_19 = arith.constant 3.200000e+01 : f32
    %44 = vector.broadcast %cst_19 : f32 to vector<1x128xf32>
    %45 = arith.divf %43, %44 : vector<1x128xf32>
    %cst_20 = arith.constant 9.99999974E-6 : f32
    %46 = vector.broadcast %cst_20 : f32 to vector<1x128xf32>
    %47 = arith.addf %45, %46 : vector<1x128xf32>
    %48 = math.rsqrt %47 : vector<1x128xf32>
    %49 = vector.broadcast %48 : vector<1x128xf32> to vector<32x128xf32>
    %50 = arith.mulf %40, %49 : vector<32x128xf32>
    %51 = vector.broadcast %33 : vector<32x1xf32> to vector<32x128xf32>
    %52 = arith.mulf %50, %51 : vector<32x128xf32>
    %53 = vector.broadcast %34 : vector<32x1xf32> to vector<32x128xf32>
    %54 = arith.addf %52, %53 : vector<32x128xf32>
    %c3 = arith.constant 3 : index
    %c0_21 = arith.constant 0 : index
    %c0_22 = arith.constant 0 : index
    %55 = vector.load %arg2[%c3, %c0_21, %c0_22] : memref<9x64x32xf32, #tpu.memory_space<vmem>>, vector<1x32x32xf32>
    %56 = vector.shape_cast %55 : vector<1x32x32xf32> to vector<32x32xf32>
    %cst_23 = arith.constant dense<0.000000e+00> : vector<32x128xf32>
    %57 = tpu.matmul %56, %32, %cst_23 {dimension_numbers = #tpu.dot_dimension_numbers<[1], [0], [0], [1], [0, 0, 1, 1], [], []>} : vector<32x32xf32>, vector<32x128xf32>, vector<32x128xf32> -> vector<32x128xf32>
    %c0_24 = arith.constant 0 : index
    %c3_25 = arith.constant 3 : index
    %58 = vector.load %arg3[%c0_24, %c3_25] : memref<64x33xf32, #tpu.memory_space<vmem>>, vector<32x1xf32>
    %59 = vector.broadcast %58 : vector<32x1xf32> to vector<32x128xf32>
    %60 = arith.addf %57, %59 : vector<32x128xf32>
    %c0_26 = arith.constant 0 : index
    %c4 = arith.constant 4 : index
    %61 = vector.load %arg3[%c0_26, %c4] : memref<64x33xf32, #tpu.memory_space<vmem>>, vector<32x1xf32>
    %c0_27 = arith.constant 0 : index
    %c5 = arith.constant 5 : index
    %62 = vector.load %arg3[%c0_27, %c5] : memref<64x33xf32, #tpu.memory_space<vmem>>, vector<32x1xf32>
    %cst_28 = arith.constant dense<0.000000e+00> : vector<128xf32>
    %63 = vector.multi_reduction <add>, %60, %cst_28 [0] : vector<32x128xf32> to vector<128xf32>
    %64 = vector.shape_cast %63 : vector<128xf32> to vector<1x128xf32>
    %cst_29 = arith.constant 3.200000e+01 : f32
    %65 = vector.broadcast %cst_29 : f32 to vector<1x128xf32>
    %66 = arith.divf %64, %65 : vector<1x128xf32>
    %67 = vector.broadcast %66 : vector<1x128xf32> to vector<32x128xf32>
    %68 = arith.subf %60, %67 : vector<32x128xf32>
    %69 = arith.mulf %68, %68 : vector<32x128xf32>
    %cst_30 = arith.constant dense<0.000000e+00> : vector<128xf32>
    %70 = vector.multi_reduction <add>, %69, %cst_30 [0] : vector<32x128xf32> to vector<128xf32>
    %71 = vector.shape_cast %70 : vector<128xf32> to vector<1x128xf32>
    %cst_31 = arith.constant 3.200000e+01 : f32
    %72 = vector.broadcast %cst_31 : f32 to vector<1x128xf32>
    %73 = arith.divf %71, %72 : vector<1x128xf32>
    %cst_32 = arith.constant 9.99999974E-6 : f32
    %74 = vector.broadcast %cst_32 : f32 to vector<1x128xf32>
    %75 = arith.addf %73, %74 : vector<1x128xf32>
    %76 = math.rsqrt %75 : vector<1x128xf32>
    %77 = vector.broadcast %76 : vector<1x128xf32> to vector<32x128xf32>
    %78 = arith.mulf %68, %77 : vector<32x128xf32>
    %79 = vector.broadcast %61 : vector<32x1xf32> to vector<32x128xf32>
    %80 = arith.mulf %78, %79 : vector<32x128xf32>
    %81 = vector.broadcast %62 : vector<32x1xf32> to vector<32x128xf32>
    %82 = arith.addf %80, %81 : vector<32x128xf32>
    %83 = arith.addf %82, %54 : vector<32x128xf32>
    %cst_33 = arith.constant 0.000000e+00 : f32
    %84 = vector.broadcast %cst_33 : f32 to vector<32x128xf32>
    %85 = arith.maximumf %83, %84 : vector<32x128xf32>
    %c1_34 = arith.constant 1 : index
    %c0_35 = arith.constant 0 : index
    %c0_36 = arith.constant 0 : index
    %86 = vector.load %arg2[%c1_34, %c0_35, %c0_36] : memref<9x64x32xf32, #tpu.memory_space<vmem>>, vector<1x32x32xf32>
    %87 = vector.shape_cast %86 : vector<1x32x32xf32> to vector<32x32xf32>
    %c0_37 = arith.constant 0 : index
    %c8 = arith.constant 8 : index
    %88 = vector.load %arg3[%c0_37, %c8] : memref<64x33xf32, #tpu.memory_space<vmem>>, vector<32x1xf32>
    %cst_38 = arith.constant dense<0.000000e+00> : vector<32x128xf32>
    %89 = tpu.matmul %87, %85, %cst_38 {dimension_numbers = #tpu.dot_dimension_numbers<[1], [0], [0], [1], [0, 0, 1, 1], [], []>} : vector<32x32xf32>, vector<32x128xf32>, vector<32x128xf32> -> vector<32x128xf32>
    %90 = vector.broadcast %88 : vector<32x1xf32> to vector<32x128xf32>
    %91 = arith.addf %89, %90 : vector<32x128xf32>
    %92 = vector.extract_strided_slice %91 {offsets = [0, 0], sizes = [16, 128], strides = [1, 1]} : vector<32x128xf32> to vector<16x128xf32>
    %93 = vector.extract_strided_slice %91 {offsets = [16, 0], sizes = [16, 128], strides = [1, 1]} : vector<32x128xf32> to vector<16x128xf32>
    %c0_39 = arith.constant 0 : index
    %c9 = arith.constant 9 : index
    %94 = vector.load %arg3[%c0_39, %c9] : memref<64x33xf32, #tpu.memory_space<vmem>>, vector<16x1xf32>
    %c0_40 = arith.constant 0 : index
    %c10 = arith.constant 10 : index
    %95 = vector.load %arg3[%c0_40, %c10] : memref<64x33xf32, #tpu.memory_space<vmem>>, vector<16x1xf32>
    %cst_41 = arith.constant dense<0.000000e+00> : vector<128xf32>
    %96 = vector.multi_reduction <add>, %92, %cst_41 [0] : vector<16x128xf32> to vector<128xf32>
    %97 = vector.shape_cast %96 : vector<128xf32> to vector<1x128xf32>
    %cst_42 = arith.constant 1.600000e+01 : f32
    %98 = vector.broadcast %cst_42 : f32 to vector<1x128xf32>
    %99 = arith.divf %97, %98 : vector<1x128xf32>
    %100 = vector.broadcast %99 : vector<1x128xf32> to vector<16x128xf32>
    %101 = arith.subf %92, %100 : vector<16x128xf32>
    %102 = arith.mulf %101, %101 : vector<16x128xf32>
    %cst_43 = arith.constant dense<0.000000e+00> : vector<128xf32>
    %103 = vector.multi_reduction <add>, %102, %cst_43 [0] : vector<16x128xf32> to vector<128xf32>
    %104 = vector.shape_cast %103 : vector<128xf32> to vector<1x128xf32>
    %cst_44 = arith.constant 1.600000e+01 : f32
    %105 = vector.broadcast %cst_44 : f32 to vector<1x128xf32>
    %106 = arith.divf %104, %105 : vector<1x128xf32>
    %cst_45 = arith.constant 9.99999974E-6 : f32
    %107 = vector.broadcast %cst_45 : f32 to vector<1x128xf32>
    %108 = arith.addf %106, %107 : vector<1x128xf32>
    %109 = math.rsqrt %108 : vector<1x128xf32>
    %110 = vector.broadcast %109 : vector<1x128xf32> to vector<16x128xf32>
    %111 = arith.mulf %101, %110 : vector<16x128xf32>
    %112 = vector.broadcast %94 : vector<16x1xf32> to vector<16x128xf32>
    %113 = arith.mulf %111, %112 : vector<16x128xf32>
    %114 = vector.broadcast %95 : vector<16x1xf32> to vector<16x128xf32>
    %115 = arith.addf %113, %114 : vector<16x128xf32>
    %cst_46 = arith.constant 0.000000e+00 : f32
    %116 = vector.broadcast %cst_46 : f32 to vector<16x128xf32>
    %117 = arith.maximumf %115, %116 : vector<16x128xf32>
    %c0_47 = arith.constant 0 : index
    %c14 = arith.constant 14 : index
    %118 = vector.load %arg3[%c0_47, %c14] : memref<64x33xf32, #tpu.memory_space<vmem>>, vector<16x1xf32>
    %c0_48 = arith.constant 0 : index
    %c15 = arith.constant 15 : index
    %119 = vector.load %arg3[%c0_48, %c15] : memref<64x33xf32, #tpu.memory_space<vmem>>, vector<16x1xf32>
    %cst_49 = arith.constant dense<0.000000e+00> : vector<128xf32>
    %120 = vector.multi_reduction <add>, %93, %cst_49 [0] : vector<16x128xf32> to vector<128xf32>
    %121 = vector.shape_cast %120 : vector<128xf32> to vector<1x128xf32>
    %cst_50 = arith.constant 1.600000e+01 : f32
    %122 = vector.broadcast %cst_50 : f32 to vector<1x128xf32>
    %123 = arith.divf %121, %122 : vector<1x128xf32>
    %124 = vector.broadcast %123 : vector<1x128xf32> to vector<16x128xf32>
    %125 = arith.subf %93, %124 : vector<16x128xf32>
    %126 = arith.mulf %125, %125 : vector<16x128xf32>
    %cst_51 = arith.constant dense<0.000000e+00> : vector<128xf32>
    %127 = vector.multi_reduction <add>, %126, %cst_51 [0] : vector<16x128xf32> to vector<128xf32>
    %128 = vector.shape_cast %127 : vector<128xf32> to vector<1x128xf32>
    %cst_52 = arith.constant 1.600000e+01 : f32
    %129 = vector.broadcast %cst_52 : f32 to vector<1x128xf32>
    %130 = arith.divf %128, %129 : vector<1x128xf32>
    %cst_53 = arith.constant 9.99999974E-6 : f32
    %131 = vector.broadcast %cst_53 : f32 to vector<1x128xf32>
    %132 = arith.addf %130, %131 : vector<1x128xf32>
    %133 = math.rsqrt %132 : vector<1x128xf32>
    %134 = vector.broadcast %133 : vector<1x128xf32> to vector<16x128xf32>
    %135 = arith.mulf %125, %134 : vector<16x128xf32>
    %136 = vector.broadcast %118 : vector<16x1xf32> to vector<16x128xf32>
    %137 = arith.mulf %135, %136 : vector<16x128xf32>
    %138 = vector.broadcast %119 : vector<16x1xf32> to vector<16x128xf32>
    %139 = arith.addf %137, %138 : vector<16x128xf32>
    %c4_54 = arith.constant 4 : index
    %c0_55 = arith.constant 0 : index
    %c0_56 = arith.constant 0 : index
    %140 = vector.load %arg2[%c4_54, %c0_55, %c0_56] : memref<9x64x32xf32, #tpu.memory_space<vmem>>, vector<1x16x16xf32>
    %141 = vector.shape_cast %140 : vector<1x16x16xf32> to vector<16x16xf32>
    %cst_57 = arith.constant dense<0.000000e+00> : vector<16x128xf32>
    %142 = tpu.matmul %141, %117, %cst_57 {dimension_numbers = #tpu.dot_dimension_numbers<[1], [0], [0], [1], [0, 0, 1, 1], [], []>} : vector<16x16xf32>, vector<16x128xf32>, vector<16x128xf32> -> vector<16x128xf32>
    %c0_58 = arith.constant 0 : index
    %c11 = arith.constant 11 : index
    %143 = vector.load %arg3[%c0_58, %c11] : memref<64x33xf32, #tpu.memory_space<vmem>>, vector<16x1xf32>
    %144 = vector.broadcast %143 : vector<16x1xf32> to vector<16x128xf32>
    %145 = arith.addf %142, %144 : vector<16x128xf32>
    %c0_59 = arith.constant 0 : index
    %c12 = arith.constant 12 : index
    %146 = vector.load %arg3[%c0_59, %c12] : memref<64x33xf32, #tpu.memory_space<vmem>>, vector<16x1xf32>
    %c0_60 = arith.constant 0 : index
    %c13 = arith.constant 13 : index
    %147 = vector.load %arg3[%c0_60, %c13] : memref<64x33xf32, #tpu.memory_space<vmem>>, vector<16x1xf32>
    %cst_61 = arith.constant dense<0.000000e+00> : vector<128xf32>
    %148 = vector.multi_reduction <add>, %145, %cst_61 [0] : vector<16x128xf32> to vector<128xf32>
    %149 = vector.shape_cast %148 : vector<128xf32> to vector<1x128xf32>
    %cst_62 = arith.constant 1.600000e+01 : f32
    %150 = vector.broadcast %cst_62 : f32 to vector<1x128xf32>
    %151 = arith.divf %149, %150 : vector<1x128xf32>
    %152 = vector.broadcast %151 : vector<1x128xf32> to vector<16x128xf32>
    %153 = arith.subf %145, %152 : vector<16x128xf32>
    %154 = arith.mulf %153, %153 : vector<16x128xf32>
    %cst_63 = arith.constant dense<0.000000e+00> : vector<128xf32>
    %155 = vector.multi_reduction <add>, %154, %cst_63 [0] : vector<16x128xf32> to vector<128xf32>
    %156 = vector.shape_cast %155 : vector<128xf32> to vector<1x128xf32>
    %cst_64 = arith.constant 1.600000e+01 : f32
    %157 = vector.broadcast %cst_64 : f32 to vector<1x128xf32>
    %158 = arith.divf %156, %157 : vector<1x128xf32>
    %cst_65 = arith.constant 9.99999974E-6 : f32
    %159 = vector.broadcast %cst_65 : f32 to vector<1x128xf32>
    %160 = arith.addf %158, %159 : vector<1x128xf32>
    %161 = math.rsqrt %160 : vector<1x128xf32>
    %162 = vector.broadcast %161 : vector<1x128xf32> to vector<16x128xf32>
    %163 = arith.mulf %153, %162 : vector<16x128xf32>
    %164 = vector.broadcast %146 : vector<16x1xf32> to vector<16x128xf32>
    %165 = arith.mulf %163, %164 : vector<16x128xf32>
    %166 = vector.broadcast %147 : vector<16x1xf32> to vector<16x128xf32>
    %167 = arith.addf %165, %166 : vector<16x128xf32>
    %168 = arith.addf %167, %139 : vector<16x128xf32>
    %cst_66 = arith.constant 0.000000e+00 : f32
    %169 = vector.broadcast %cst_66 : f32 to vector<16x128xf32>
    %170 = arith.maximumf %168, %169 : vector<16x128xf32>
    %c2_67 = arith.constant 2 : index
    %c0_68 = arith.constant 0 : index
    %c0_69 = arith.constant 0 : index
    %171 = vector.load %arg2[%c2_67, %c0_68, %c0_69] : memref<9x64x32xf32, #tpu.memory_space<vmem>>, vector<1x8x16xf32>
    %172 = vector.shape_cast %171 : vector<1x8x16xf32> to vector<8x16xf32>
    %c0_70 = arith.constant 0 : index
    %c16 = arith.constant 16 : index
    %173 = vector.load %arg3[%c0_70, %c16] : memref<64x33xf32, #tpu.memory_space<vmem>>, vector<8x1xf32>
    %cst_71 = arith.constant dense<0.000000e+00> : vector<8x128xf32>
    %174 = tpu.matmul %172, %170, %cst_71 {dimension_numbers = #tpu.dot_dimension_numbers<[1], [0], [0], [1], [0, 0, 1, 1], [], []>} : vector<8x16xf32>, vector<16x128xf32>, vector<8x128xf32> -> vector<8x128xf32>
    %175 = vector.broadcast %173 : vector<8x1xf32> to vector<8x128xf32>
    %176 = arith.addf %174, %175 : vector<8x128xf32>
    %177 = vector.extract_strided_slice %176 {offsets = [0, 0], sizes = [4, 128], strides = [1, 1]} : vector<8x128xf32> to vector<4x128xf32>
    %178 = vector.extract_strided_slice %176 {offsets = [4, 0], sizes = [4, 128], strides = [1, 1]} : vector<8x128xf32> to vector<4x128xf32>
    %c0_72 = arith.constant 0 : index
    %c17 = arith.constant 17 : index
    %179 = vector.load %arg3[%c0_72, %c17] : memref<64x33xf32, #tpu.memory_space<vmem>>, vector<4x1xf32>
    %c0_73 = arith.constant 0 : index
    %c18 = arith.constant 18 : index
    %180 = vector.load %arg3[%c0_73, %c18] : memref<64x33xf32, #tpu.memory_space<vmem>>, vector<4x1xf32>
    %cst_74 = arith.constant dense<0.000000e+00> : vector<128xf32>
    %181 = vector.multi_reduction <add>, %177, %cst_74 [0] : vector<4x128xf32> to vector<128xf32>
    %182 = vector.shape_cast %181 : vector<128xf32> to vector<1x128xf32>
    %cst_75 = arith.constant 4.000000e+00 : f32
    %183 = vector.broadcast %cst_75 : f32 to vector<1x128xf32>
    %184 = arith.divf %182, %183 : vector<1x128xf32>
    %185 = vector.broadcast %184 : vector<1x128xf32> to vector<4x128xf32>
    %186 = arith.subf %177, %185 : vector<4x128xf32>
    %187 = arith.mulf %186, %186 : vector<4x128xf32>
    %cst_76 = arith.constant dense<0.000000e+00> : vector<128xf32>
    %188 = vector.multi_reduction <add>, %187, %cst_76 [0] : vector<4x128xf32> to vector<128xf32>
    %189 = vector.shape_cast %188 : vector<128xf32> to vector<1x128xf32>
    %cst_77 = arith.constant 4.000000e+00 : f32
    %190 = vector.broadcast %cst_77 : f32 to vector<1x128xf32>
    %191 = arith.divf %189, %190 : vector<1x128xf32>
    %cst_78 = arith.constant 9.99999974E-6 : f32
    %192 = vector.broadcast %cst_78 : f32 to vector<1x128xf32>
    %193 = arith.addf %191, %192 : vector<1x128xf32>
    %194 = math.rsqrt %193 : vector<1x128xf32>
    %195 = vector.broadcast %194 : vector<1x128xf32> to vector<4x128xf32>
    %196 = arith.mulf %186, %195 : vector<4x128xf32>
    %197 = vector.broadcast %179 : vector<4x1xf32> to vector<4x128xf32>
    %198 = arith.mulf %196, %197 : vector<4x128xf32>
    %199 = vector.broadcast %180 : vector<4x1xf32> to vector<4x128xf32>
    %200 = arith.addf %198, %199 : vector<4x128xf32>
    %cst_79 = arith.constant 0.000000e+00 : f32
    %201 = vector.broadcast %cst_79 : f32 to vector<4x128xf32>
    %202 = arith.maximumf %200, %201 : vector<4x128xf32>
    %c0_80 = arith.constant 0 : index
    %c22 = arith.constant 22 : index
    %203 = vector.load %arg3[%c0_80, %c22] : memref<64x33xf32, #tpu.memory_space<vmem>>, vector<4x1xf32>
    %c0_81 = arith.constant 0 : index
    %c23 = arith.constant 23 : index
    %204 = vector.load %arg3[%c0_81, %c23] : memref<64x33xf32, #tpu.memory_space<vmem>>, vector<4x1xf32>
    %cst_82 = arith.constant dense<0.000000e+00> : vector<128xf32>
    %205 = vector.multi_reduction <add>, %178, %cst_82 [0] : vector<4x128xf32> to vector<128xf32>
    %206 = vector.shape_cast %205 : vector<128xf32> to vector<1x128xf32>
    %cst_83 = arith.constant 4.000000e+00 : f32
    %207 = vector.broadcast %cst_83 : f32 to vector<1x128xf32>
    %208 = arith.divf %206, %207 : vector<1x128xf32>
    %209 = vector.broadcast %208 : vector<1x128xf32> to vector<4x128xf32>
    %210 = arith.subf %178, %209 : vector<4x128xf32>
    %211 = arith.mulf %210, %210 : vector<4x128xf32>
    %cst_84 = arith.constant dense<0.000000e+00> : vector<128xf32>
    %212 = vector.multi_reduction <add>, %211, %cst_84 [0] : vector<4x128xf32> to vector<128xf32>
    %213 = vector.shape_cast %212 : vector<128xf32> to vector<1x128xf32>
    %cst_85 = arith.constant 4.000000e+00 : f32
    %214 = vector.broadcast %cst_85 : f32 to vector<1x128xf32>
    %215 = arith.divf %213, %214 : vector<1x128xf32>
    %cst_86 = arith.constant 9.99999974E-6 : f32
    %216 = vector.broadcast %cst_86 : f32 to vector<1x128xf32>
    %217 = arith.addf %215, %216 : vector<1x128xf32>
    %218 = math.rsqrt %217 : vector<1x128xf32>
    %219 = vector.broadcast %218 : vector<1x128xf32> to vector<4x128xf32>
    %220 = arith.mulf %210, %219 : vector<4x128xf32>
    %221 = vector.broadcast %203 : vector<4x1xf32> to vector<4x128xf32>
    %222 = arith.mulf %220, %221 : vector<4x128xf32>
    %223 = vector.broadcast %204 : vector<4x1xf32> to vector<4x128xf32>
    %224 = arith.addf %222, %223 : vector<4x128xf32>
    %c5_87 = arith.constant 5 : index
    %c0_88 = arith.constant 0 : index
    %c0_89 = arith.constant 0 : index
    %225 = vector.load %arg2[%c5_87, %c0_88, %c0_89] : memref<9x64x32xf32, #tpu.memory_space<vmem>>, vector<1x4x4xf32>
    %226 = vector.shape_cast %225 : vector<1x4x4xf32> to vector<4x4xf32>
    %cst_90 = arith.constant dense<0.000000e+00> : vector<4x128xf32>
    %227 = tpu.matmul %226, %202, %cst_90 {dimension_numbers = #tpu.dot_dimension_numbers<[1], [0], [0], [1], [0, 0, 1, 1], [], []>} : vector<4x4xf32>, vector<4x128xf32>, vector<4x128xf32> -> vector<4x128xf32>
    %c0_91 = arith.constant 0 : index
    %c19 = arith.constant 19 : index
    %228 = vector.load %arg3[%c0_91, %c19] : memref<64x33xf32, #tpu.memory_space<vmem>>, vector<4x1xf32>
    %229 = vector.broadcast %228 : vector<4x1xf32> to vector<4x128xf32>
    %230 = arith.addf %227, %229 : vector<4x128xf32>
    %c0_92 = arith.constant 0 : index
    %c20 = arith.constant 20 : index
    %231 = vector.load %arg3[%c0_92, %c20] : memref<64x33xf32, #tpu.memory_space<vmem>>, vector<4x1xf32>
    %c0_93 = arith.constant 0 : index
    %c21 = arith.constant 21 : index
    %232 = vector.load %arg3[%c0_93, %c21] : memref<64x33xf32, #tpu.memory_space<vmem>>, vector<4x1xf32>
    %cst_94 = arith.constant dense<0.000000e+00> : vector<128xf32>
    %233 = vector.multi_reduction <add>, %230, %cst_94 [0] : vector<4x128xf32> to vector<128xf32>
    %234 = vector.shape_cast %233 : vector<128xf32> to vector<1x128xf32>
    %cst_95 = arith.constant 4.000000e+00 : f32
    %235 = vector.broadcast %cst_95 : f32 to vector<1x128xf32>
    %236 = arith.divf %234, %235 : vector<1x128xf32>
    %237 = vector.broadcast %236 : vector<1x128xf32> to vector<4x128xf32>
    %238 = arith.subf %230, %237 : vector<4x128xf32>
    %239 = arith.mulf %238, %238 : vector<4x128xf32>
    %cst_96 = arith.constant dense<0.000000e+00> : vector<128xf32>
    %240 = vector.multi_reduction <add>, %239, %cst_96 [0] : vector<4x128xf32> to vector<128xf32>
    %241 = vector.shape_cast %240 : vector<128xf32> to vector<1x128xf32>
    %cst_97 = arith.constant 4.000000e+00 : f32
    %242 = vector.broadcast %cst_97 : f32 to vector<1x128xf32>
    %243 = arith.divf %241, %242 : vector<1x128xf32>
    %cst_98 = arith.constant 9.99999974E-6 : f32
    %244 = vector.broadcast %cst_98 : f32 to vector<1x128xf32>
    %245 = arith.addf %243, %244 : vector<1x128xf32>
    %246 = math.rsqrt %245 : vector<1x128xf32>
    %247 = vector.broadcast %246 : vector<1x128xf32> to vector<4x128xf32>
    %248 = arith.mulf %238, %247 : vector<4x128xf32>
    %249 = vector.broadcast %231 : vector<4x1xf32> to vector<4x128xf32>
    %250 = arith.mulf %248, %249 : vector<4x128xf32>
    %251 = vector.broadcast %232 : vector<4x1xf32> to vector<4x128xf32>
    %252 = arith.addf %250, %251 : vector<4x128xf32>
    %253 = arith.addf %252, %224 : vector<4x128xf32>
    %cst_99 = arith.constant 0.000000e+00 : f32
    %254 = vector.broadcast %cst_99 : f32 to vector<4x128xf32>
    %255 = arith.maximumf %253, %254 : vector<4x128xf32>
    %c0_100 = arith.constant 0 : index
    %c24 = arith.constant 24 : index
    %256 = vector.load %arg3[%c0_100, %c24] : memref<64x33xf32, #tpu.memory_space<vmem>>, vector<4x1xf32>
    %c0_101 = arith.constant 0 : index
    %c25 = arith.constant 25 : index
    %257 = vector.load %arg3[%c0_101, %c25] : memref<64x33xf32, #tpu.memory_space<vmem>>, vector<4x1xf32>
    %c0_102 = arith.constant 0 : index
    %c26 = arith.constant 26 : index
    %258 = vector.load %arg3[%c0_102, %c26] : memref<64x33xf32, #tpu.memory_space<vmem>>, vector<4x1xf32>
    %cst_103 = arith.constant dense<0.000000e+00> : vector<128xf32>
    %259 = vector.multi_reduction <add>, %255, %cst_103 [0] : vector<4x128xf32> to vector<128xf32>
    %260 = vector.shape_cast %259 : vector<128xf32> to vector<1x128xf32>
    %cst_104 = arith.constant 4.000000e+00 : f32
    %261 = vector.broadcast %cst_104 : f32 to vector<1x128xf32>
    %262 = arith.divf %260, %261 : vector<1x128xf32>
    %263 = vector.broadcast %262 : vector<1x128xf32> to vector<4x128xf32>
    %264 = arith.subf %255, %263 : vector<4x128xf32>
    %265 = arith.mulf %264, %264 : vector<4x128xf32>
    %cst_105 = arith.constant dense<0.000000e+00> : vector<128xf32>
    %266 = vector.multi_reduction <add>, %265, %cst_105 [0] : vector<4x128xf32> to vector<128xf32>
    %267 = vector.shape_cast %266 : vector<128xf32> to vector<1x128xf32>
    %cst_106 = arith.constant 4.000000e+00 : f32
    %268 = vector.broadcast %cst_106 : f32 to vector<1x128xf32>
    %269 = arith.divf %267, %268 : vector<1x128xf32>
    %cst_107 = arith.constant 9.99999974E-6 : f32
    %270 = vector.broadcast %cst_107 : f32 to vector<1x128xf32>
    %271 = arith.addf %269, %270 : vector<1x128xf32>
    %272 = math.rsqrt %271 : vector<1x128xf32>
    %273 = vector.broadcast %272 : vector<1x128xf32> to vector<4x128xf32>
    %274 = arith.mulf %264, %273 : vector<4x128xf32>
    %275 = vector.broadcast %256 : vector<4x1xf32> to vector<4x128xf32>
    %276 = arith.mulf %274, %275 : vector<4x128xf32>
    %277 = vector.broadcast %257 : vector<4x1xf32> to vector<4x128xf32>
    %278 = arith.addf %276, %277 : vector<4x128xf32>
    %c6_108 = arith.constant 6 : index
    %c0_109 = arith.constant 0 : index
    %c0_110 = arith.constant 0 : index
    %279 = vector.load %arg2[%c6_108, %c0_109, %c0_110] : memref<9x64x32xf32, #tpu.memory_space<vmem>>, vector<1x4x4xf32>
    %280 = vector.shape_cast %279 : vector<1x4x4xf32> to vector<4x4xf32>
    %cst_111 = arith.constant dense<0.000000e+00> : vector<4x128xf32>
    %281 = tpu.matmul %280, %278, %cst_111 {dimension_numbers = #tpu.dot_dimension_numbers<[1], [0], [0], [1], [0, 0, 1, 1], [], []>} : vector<4x4xf32>, vector<4x128xf32>, vector<4x128xf32> -> vector<4x128xf32>
    %282 = vector.broadcast %258 : vector<4x1xf32> to vector<4x128xf32>
    %283 = arith.addf %281, %282 : vector<4x128xf32>
    %284 = math.tanh %283 : vector<4x128xf32>
    %cst_112 = arith.constant 3.14159274 : f32
    %285 = vector.broadcast %cst_112 : f32 to vector<4x128xf32>
    %286 = arith.mulf %284, %285 : vector<4x128xf32>
    %cst_113 = arith.constant 5.000000e-01 : f32
    %287 = vector.broadcast %cst_113 : f32 to vector<4x128xf32>
    %288 = arith.mulf %287, %286 : vector<4x128xf32>
    %289 = math.cos %288 : vector<4x128xf32>
    %290 = math.sin %288 : vector<4x128xf32>
    %291 = arith.mulf %289, %289 : vector<4x128xf32>
    %292 = arith.mulf %289, %290 : vector<4x128xf32>
    %cst_114 = arith.constant 0.000000e+00 : f32
    %293 = vector.broadcast %cst_114 : f32 to vector<4x128xf32>
    %294 = arith.subf %293, %292 : vector<4x128xf32>
    %295 = arith.mulf %290, %289 : vector<4x128xf32>
    %296 = arith.mulf %290, %290 : vector<4x128xf32>
    %c0_115 = arith.constant 0 : index
    %c29 = arith.constant 29 : index
    %297 = vector.load %arg3[%c0_115, %c29] : memref<64x33xf32, #tpu.memory_space<vmem>>, vector<16x1xf32>
    %cst_116 = arith.constant 1.000000e+00 : f32
    %298 = vector.broadcast %cst_116 : f32 to vector<16x1xf32>
    %299 = arith.subf %298, %297 : vector<16x1xf32>
    %300 = vector.extract_strided_slice %291 {offsets = [0, 0], sizes = [1, 128], strides = [1, 1]} : vector<4x128xf32> to vector<1x128xf32>
    %301 = vector.broadcast %300 : vector<1x128xf32> to vector<16x128xf32>
    %302 = vector.broadcast %299 : vector<16x1xf32> to vector<16x128xf32>
    %303 = arith.mulf %301, %302 : vector<16x128xf32>
    %304 = vector.extract_strided_slice %295 {offsets = [0, 0], sizes = [1, 128], strides = [1, 1]} : vector<4x128xf32> to vector<1x128xf32>
    %305 = vector.broadcast %304 : vector<1x128xf32> to vector<16x128xf32>
    %306 = vector.broadcast %297 : vector<16x1xf32> to vector<16x128xf32>
    %307 = arith.mulf %305, %306 : vector<16x128xf32>
    %308 = arith.addf %303, %307 : vector<16x128xf32>
    %309 = vector.extract_strided_slice %294 {offsets = [0, 0], sizes = [1, 128], strides = [1, 1]} : vector<4x128xf32> to vector<1x128xf32>
    %310 = vector.broadcast %309 : vector<1x128xf32> to vector<16x128xf32>
    %311 = vector.broadcast %299 : vector<16x1xf32> to vector<16x128xf32>
    %312 = arith.mulf %310, %311 : vector<16x128xf32>
    %313 = vector.extract_strided_slice %296 {offsets = [0, 0], sizes = [1, 128], strides = [1, 1]} : vector<4x128xf32> to vector<1x128xf32>
    %314 = vector.broadcast %313 : vector<1x128xf32> to vector<16x128xf32>
    %315 = vector.broadcast %297 : vector<16x1xf32> to vector<16x128xf32>
    %316 = arith.mulf %314, %315 : vector<16x128xf32>
    %317 = arith.addf %312, %316 : vector<16x128xf32>
    %c0_117 = arith.constant 0 : index
    %c30 = arith.constant 30 : index
    %318 = vector.load %arg3[%c0_117, %c30] : memref<64x33xf32, #tpu.memory_space<vmem>>, vector<16x1xf32>
    %cst_118 = arith.constant 1.000000e+00 : f32
    %319 = vector.broadcast %cst_118 : f32 to vector<16x1xf32>
    %320 = arith.subf %319, %318 : vector<16x1xf32>
    %321 = vector.extract_strided_slice %291 {offsets = [1, 0], sizes = [1, 128], strides = [1, 1]} : vector<4x128xf32> to vector<1x128xf32>
    %322 = vector.broadcast %321 : vector<1x128xf32> to vector<16x128xf32>
    %323 = vector.broadcast %320 : vector<16x1xf32> to vector<16x128xf32>
    %324 = arith.mulf %322, %323 : vector<16x128xf32>
    %325 = vector.extract_strided_slice %295 {offsets = [1, 0], sizes = [1, 128], strides = [1, 1]} : vector<4x128xf32> to vector<1x128xf32>
    %326 = vector.broadcast %325 : vector<1x128xf32> to vector<16x128xf32>
    %327 = vector.broadcast %318 : vector<16x1xf32> to vector<16x128xf32>
    %328 = arith.mulf %326, %327 : vector<16x128xf32>
    %329 = arith.addf %324, %328 : vector<16x128xf32>
    %330 = vector.extract_strided_slice %294 {offsets = [1, 0], sizes = [1, 128], strides = [1, 1]} : vector<4x128xf32> to vector<1x128xf32>
    %331 = vector.broadcast %330 : vector<1x128xf32> to vector<16x128xf32>
    %332 = vector.broadcast %320 : vector<16x1xf32> to vector<16x128xf32>
    %333 = arith.mulf %331, %332 : vector<16x128xf32>
    %334 = vector.extract_strided_slice %296 {offsets = [1, 0], sizes = [1, 128], strides = [1, 1]} : vector<4x128xf32> to vector<1x128xf32>
    %335 = vector.broadcast %334 : vector<1x128xf32> to vector<16x128xf32>
    %336 = vector.broadcast %318 : vector<16x1xf32> to vector<16x128xf32>
    %337 = arith.mulf %335, %336 : vector<16x128xf32>
    %338 = arith.addf %333, %337 : vector<16x128xf32>
    %339 = arith.mulf %308, %329 : vector<16x128xf32>
    %340 = arith.mulf %317, %338 : vector<16x128xf32>
    %341 = arith.subf %339, %340 : vector<16x128xf32>
    %342 = arith.mulf %308, %338 : vector<16x128xf32>
    %343 = arith.mulf %317, %329 : vector<16x128xf32>
    %344 = arith.addf %342, %343 : vector<16x128xf32>
    %c0_119 = arith.constant 0 : index
    %c31 = arith.constant 31 : index
    %345 = vector.load %arg3[%c0_119, %c31] : memref<64x33xf32, #tpu.memory_space<vmem>>, vector<16x1xf32>
    %cst_120 = arith.constant 1.000000e+00 : f32
    %346 = vector.broadcast %cst_120 : f32 to vector<16x1xf32>
    %347 = arith.subf %346, %345 : vector<16x1xf32>
    %348 = vector.extract_strided_slice %291 {offsets = [2, 0], sizes = [1, 128], strides = [1, 1]} : vector<4x128xf32> to vector<1x128xf32>
    %349 = vector.broadcast %348 : vector<1x128xf32> to vector<16x128xf32>
    %350 = vector.broadcast %347 : vector<16x1xf32> to vector<16x128xf32>
    %351 = arith.mulf %349, %350 : vector<16x128xf32>
    %352 = vector.extract_strided_slice %295 {offsets = [2, 0], sizes = [1, 128], strides = [1, 1]} : vector<4x128xf32> to vector<1x128xf32>
    %353 = vector.broadcast %352 : vector<1x128xf32> to vector<16x128xf32>
    %354 = vector.broadcast %345 : vector<16x1xf32> to vector<16x128xf32>
    %355 = arith.mulf %353, %354 : vector<16x128xf32>
    %356 = arith.addf %351, %355 : vector<16x128xf32>
    %357 = vector.extract_strided_slice %294 {offsets = [2, 0], sizes = [1, 128], strides = [1, 1]} : vector<4x128xf32> to vector<1x128xf32>
    %358 = vector.broadcast %357 : vector<1x128xf32> to vector<16x128xf32>
    %359 = vector.broadcast %347 : vector<16x1xf32> to vector<16x128xf32>
    %360 = arith.mulf %358, %359 : vector<16x128xf32>
    %361 = vector.extract_strided_slice %296 {offsets = [2, 0], sizes = [1, 128], strides = [1, 1]} : vector<4x128xf32> to vector<1x128xf32>
    %362 = vector.broadcast %361 : vector<1x128xf32> to vector<16x128xf32>
    %363 = vector.broadcast %345 : vector<16x1xf32> to vector<16x128xf32>
    %364 = arith.mulf %362, %363 : vector<16x128xf32>
    %365 = arith.addf %360, %364 : vector<16x128xf32>
    %366 = arith.mulf %341, %356 : vector<16x128xf32>
    %367 = arith.mulf %344, %365 : vector<16x128xf32>
    %368 = arith.subf %366, %367 : vector<16x128xf32>
    %369 = arith.mulf %341, %365 : vector<16x128xf32>
    %370 = arith.mulf %344, %356 : vector<16x128xf32>
    %371 = arith.addf %369, %370 : vector<16x128xf32>
    %c0_121 = arith.constant 0 : index
    %c32 = arith.constant 32 : index
    %372 = vector.load %arg3[%c0_121, %c32] : memref<64x33xf32, #tpu.memory_space<vmem>>, vector<16x1xf32>
    %cst_122 = arith.constant 1.000000e+00 : f32
    %373 = vector.broadcast %cst_122 : f32 to vector<16x1xf32>
    %374 = arith.subf %373, %372 : vector<16x1xf32>
    %375 = vector.extract_strided_slice %291 {offsets = [3, 0], sizes = [1, 128], strides = [1, 1]} : vector<4x128xf32> to vector<1x128xf32>
    %376 = vector.broadcast %375 : vector<1x128xf32> to vector<16x128xf32>
    %377 = vector.broadcast %374 : vector<16x1xf32> to vector<16x128xf32>
    %378 = arith.mulf %376, %377 : vector<16x128xf32>
    %379 = vector.extract_strided_slice %295 {offsets = [3, 0], sizes = [1, 128], strides = [1, 1]} : vector<4x128xf32> to vector<1x128xf32>
    %380 = vector.broadcast %379 : vector<1x128xf32> to vector<16x128xf32>
    %381 = vector.broadcast %372 : vector<16x1xf32> to vector<16x128xf32>
    %382 = arith.mulf %380, %381 : vector<16x128xf32>
    %383 = arith.addf %378, %382 : vector<16x128xf32>
    %384 = vector.extract_strided_slice %294 {offsets = [3, 0], sizes = [1, 128], strides = [1, 1]} : vector<4x128xf32> to vector<1x128xf32>
    %385 = vector.broadcast %384 : vector<1x128xf32> to vector<16x128xf32>
    %386 = vector.broadcast %374 : vector<16x1xf32> to vector<16x128xf32>
    %387 = arith.mulf %385, %386 : vector<16x128xf32>
    %388 = vector.extract_strided_slice %296 {offsets = [3, 0], sizes = [1, 128], strides = [1, 1]} : vector<4x128xf32> to vector<1x128xf32>
    %389 = vector.broadcast %388 : vector<1x128xf32> to vector<16x128xf32>
    %390 = vector.broadcast %372 : vector<16x1xf32> to vector<16x128xf32>
    %391 = arith.mulf %389, %390 : vector<16x128xf32>
    %392 = arith.addf %387, %391 : vector<16x128xf32>
    %393 = arith.mulf %368, %383 : vector<16x128xf32>
    %394 = arith.mulf %371, %392 : vector<16x128xf32>
    %395 = arith.subf %393, %394 : vector<16x128xf32>
    %396 = arith.mulf %368, %392 : vector<16x128xf32>
    %397 = arith.mulf %371, %383 : vector<16x128xf32>
    %398 = arith.addf %396, %397 : vector<16x128xf32>
    %399 = tpu.concatenate %395, %398 in 0 : vector<16x128xf32>, vector<16x128xf32> -> vector<32x128xf32>
    %c7_123 = arith.constant 7 : index
    %c0_124 = arith.constant 0 : index
    %c0_125 = arith.constant 0 : index
    %400 = vector.load %arg2[%c7_123, %c0_124, %c0_125] : memref<9x64x32xf32, #tpu.memory_space<vmem>>, vector<1x32x32xf32>
    %401 = vector.shape_cast %400 : vector<1x32x32xf32> to vector<32x32xf32>
    %cst_126 = arith.constant dense<0.000000e+00> : vector<32x128xf32>
    %402 = tpu.matmul %401, %399, %cst_126 {dimension_numbers = #tpu.dot_dimension_numbers<[1], [0], [0], [1], [0, 0, 1, 1], [], []>} : vector<32x32xf32>, vector<32x128xf32>, vector<32x128xf32> -> vector<32x128xf32>
    %403 = vector.extract_strided_slice %402 {offsets = [0, 0], sizes = [16, 128], strides = [1, 1]} : vector<32x128xf32> to vector<16x128xf32>
    %404 = vector.extract_strided_slice %402 {offsets = [16, 0], sizes = [16, 128], strides = [1, 1]} : vector<32x128xf32> to vector<16x128xf32>
    %405 = arith.mulf %403, %403 : vector<16x128xf32>
    %406 = arith.mulf %404, %404 : vector<16x128xf32>
    %407 = arith.addf %405, %406 : vector<16x128xf32>
    %c8_127 = arith.constant 8 : index
    %c0_128 = arith.constant 0 : index
    %c0_129 = arith.constant 0 : index
    %408 = vector.load %arg2[%c8_127, %c0_128, %c0_129] : memref<9x64x32xf32, #tpu.memory_space<vmem>>, vector<1x4x16xf32>
    %409 = vector.shape_cast %408 : vector<1x4x16xf32> to vector<4x16xf32>
    %cst_130 = arith.constant dense<0.000000e+00> : vector<4x128xf32>
    %410 = tpu.matmul %409, %407, %cst_130 {dimension_numbers = #tpu.dot_dimension_numbers<[1], [0], [0], [1], [0, 0, 1, 1], [], []>} : vector<4x16xf32>, vector<16x128xf32>, vector<4x128xf32> -> vector<4x128xf32>
    %cst_131 = arith.constant dense<0.000000e+00> : vector<128xf32>
    %411 = vector.multi_reduction <add>, %410, %cst_131 [0] : vector<4x128xf32> to vector<128xf32>
    %412 = vector.shape_cast %411 : vector<128xf32> to vector<1x128xf32>
    %cst_132 = arith.constant 4.000000e+00 : f32
    %413 = vector.broadcast %cst_132 : f32 to vector<1x128xf32>
    %414 = arith.divf %412, %413 : vector<1x128xf32>
    %415 = vector.broadcast %414 : vector<1x128xf32> to vector<4x128xf32>
    %416 = arith.subf %410, %415 : vector<4x128xf32>
    %417 = arith.mulf %416, %416 : vector<4x128xf32>
    %cst_133 = arith.constant dense<0.000000e+00> : vector<128xf32>
    %418 = vector.multi_reduction <add>, %417, %cst_133 [0] : vector<4x128xf32> to vector<128xf32>
    %419 = vector.shape_cast %418 : vector<128xf32> to vector<1x128xf32>
    %cst_134 = arith.constant 4.000000e+00 : f32
    %420 = vector.broadcast %cst_134 : f32 to vector<1x128xf32>
    %421 = arith.divf %419, %420 : vector<1x128xf32>
    %cst_135 = arith.constant 9.99999974E-6 : f32
    %422 = vector.broadcast %cst_135 : f32 to vector<1x128xf32>
    %423 = arith.addf %421, %422 : vector<1x128xf32>
    %424 = math.rsqrt %423 : vector<1x128xf32>
    %425 = vector.broadcast %424 : vector<1x128xf32> to vector<4x128xf32>
    %426 = arith.mulf %416, %425 : vector<4x128xf32>
    %427 = vector.broadcast %256 : vector<4x1xf32> to vector<4x128xf32>
    %428 = arith.mulf %426, %427 : vector<4x128xf32>
    %429 = vector.broadcast %257 : vector<4x1xf32> to vector<4x128xf32>
    %430 = arith.addf %428, %429 : vector<4x128xf32>
    %c0_136 = arith.constant 0 : index
    %c27 = arith.constant 27 : index
    %431 = vector.load %arg3[%c0_136, %c27] : memref<64x33xf32, #tpu.memory_space<vmem>>, vector<4x1xf32>
    %c0_137 = arith.constant 0 : index
    %c28 = arith.constant 28 : index
    %432 = vector.load %arg3[%c0_137, %c28] : memref<64x33xf32, #tpu.memory_space<vmem>>, vector<1x1xf32>
    %433 = vector.broadcast %431 : vector<4x1xf32> to vector<4x128xf32>
    %434 = arith.mulf %433, %430 : vector<4x128xf32>
    %cst_138 = arith.constant dense<0.000000e+00> : vector<128xf32>
    %435 = vector.multi_reduction <add>, %434, %cst_138 [0] : vector<4x128xf32> to vector<128xf32>
    %436 = vector.shape_cast %435 : vector<128xf32> to vector<1x128xf32>
    %437 = vector.broadcast %432 : vector<1x1xf32> to vector<1x128xf32>
    %438 = arith.addf %436, %437 : vector<1x128xf32>
    %cst_139 = arith.constant 0.000000e+00 : f32
    %439 = vector.broadcast %cst_139 : f32 to vector<1x128xf32>
    %440 = arith.subf %439, %438 : vector<1x128xf32>
    %441 = math.exp %440 : vector<1x128xf32>
    %cst_140 = arith.constant 1.000000e+00 : f32
    %442 = vector.broadcast %cst_140 : f32 to vector<1x128xf32>
    %443 = arith.addf %442, %441 : vector<1x128xf32>
    %cst_141 = arith.constant 1.000000e+00 : f32
    %444 = vector.broadcast %cst_141 : f32 to vector<1x128xf32>
    %445 = arith.divf %444, %443 : vector<1x128xf32>
    %c0_142 = arith.constant 0 : index
    %c0_143 = arith.constant 0 : index
    %446 = vector.load %arg4[%c0_142, %c0_143] : memref<1x128xf32, #tpu.memory_space<vmem>>, vector<1x128xf32>
    tpu.vector_store %arg4[%c0_142, %c0_143], %445 {strides = array<i32>} : memref<1x128xf32, #tpu.memory_space<vmem>>, vector<1x128xf32>,
    return
  }
  func.func @transform_0(%arg0: i32) -> (i32, i32) {
    %c0_i32 = arith.constant 0 : i32
    %c0_i32_0 = arith.constant 0 : i32
    return %c0_i32, %arg0 : i32, i32
  }
  func.func @transform_1(%arg0: i32) -> (i32, i32, i32) {
    %c0_i32 = arith.constant 0 : i32
    %c0_i32_0 = arith.constant 0 : i32
    %c0_i32_1 = arith.constant 0 : i32
    %c0_i32_2 = arith.constant 0 : i32
    return %c0_i32, %c0_i32_0, %c0_i32_1 : i32, i32, i32
  }
  func.func @transform_2(%arg0: i32) -> (i32, i32) {
    %c0_i32 = arith.constant 0 : i32
    %c0_i32_0 = arith.constant 0 : i32
    %c0_i32_1 = arith.constant 0 : i32
    return %c0_i32, %c0_i32_0 : i32, i32
  }
  func.func @transform_3(%arg0: i32) -> (i32, i32) {
    %c0_i32 = arith.constant 0 : i32
    %c0_i32_0 = arith.constant 0 : i32
    return %c0_i32, %arg0 : i32, i32
  }
}

</mosaic_0001>

<llo_original>
// kernel: tpu_custom_call.1
$region0: #{tpu_custom_call.1}
  #allocation0 [shape = 'u32[]', space=smem, size = 0x4, offset = 0x4, fixed_abs, tag = 'smem constant byte address 0x4 - core index']
  #allocation1 [shape = 'u32[144,128]{1,0:T(1,128)}', space=vmem, size = 0x12000, scoped, tag = 'internal scratch']
  %s0 = inlined_call_operand.vmem [shape: f32[16,128], index: 0, kind: input, shape index: {}]
  %s1 = inlined_call_operand.vmem [shape: f32[9,64,32], index: 1, kind: input, shape index: {}]
  %s2 = inlined_call_operand.vmem [shape: f32[64,33], index: 2, kind: input, shape index: {}]
  %s3 = inlined_call_operand.hbm [shape: f32[1,128], index: 3, kind: output, shape index: {}]
  %s4 = sld [smem:[#allocation0]]
  $region22: #{tpu_custom_call.1} parent=0
    _
  %s6 = ssub.s32 1, %s4
  %s7 = scalar_select 0, %s6, %s4
  $region1: #{tpu_custom_call.1} parent=0
    #allocation2 [shape = 'u8[512]{0}', space=vmem, size = 0x400, scoped, tag = 'output window, operand 0, single buffered']
    #allocation3 [shape = 's32[1]{0}', space=sflag, size = 0x4, scoped, tag = 'scoped memory for tpu_custom_call.1']
    %8 = vsyncpa [#allocation3], 0
    // Predicated region
    $region2: #{tpu_custom_call.1} parent=1 // pred_check
      _
    $region3: #{tpu_custom_call.1} parent=1 // pred_check_branch
      %10 = sbr.rel (0) target = $region5
    $region4: #{tpu_custom_call.1} parent=1 // pred_region
      _
    $region5: #{tpu_custom_call.1} parent=1 // pred_fallthru
      _
    // Predicated region
    $region6: #{tpu_custom_call.1} parent=1 // pred_check
      _
    $region7: #{tpu_custom_call.1} parent=1 // pred_check_branch
      %12 = sbr.rel (0) target = $region9
    $region8: #{tpu_custom_call.1} parent=1 // pred_region
      _
    $region9: #{tpu_custom_call.1} parent=1 // pred_fallthru
      _
    // Predicated region
    $region10: #{tpu_custom_call.1} parent=1 // pred_check
      _
    $region11: #{tpu_custom_call.1} parent=1 // pred_check_branch
      %14 = sbr.rel (0) target = $region13
    $region12: #{tpu_custom_call.1} parent=1 // pred_region
      _
    $region13: #{tpu_custom_call.1} parent=1 // pred_fallthru
      _
    %v15 = vld [vmem:[%s0] sm:$0xff]
    %v16 = vld [vmem:[%s0 + $0x8] sm:$0xff]
    %v17 = vld [vmem:[%s1] sm:$0xff]
    %v18 = vld [vmem:[%s1 + $0x8] sm:$0xff]
    %v19 = vld [vmem:[%s1 + $0x10] sm:$0xff]
    %v20 = vld [vmem:[%s1 + $0x18] sm:$0xff]
    %v21 = vld [vmem:[%s1 + $0x20] sm:$0xff]
    %v22 = vld [vmem:[%s1 + $0x28] sm:$0xff]
    %v23 = vld [vmem:[%s1 + $0x30] sm:$0xff]
    %v24 = vld [vmem:[%s1 + $0x38] sm:$0xff]
    %v25 = vld [vmem:[%s2] sm:$0xff]
    %v26 = vld [vmem:[%s2 + $0x8] sm:$0xff]
    %v27 = vld [vmem:[%s2 + $0x10] sm:$0xff]
    %v28 = vld [vmem:[%s2 + $0x18] sm:$0xff]
    %v29 = vld [vmem:[%s2 + $0x20] sm:$0xff]
    %v30 = vld [vmem:[%s2 + $0x28] sm:$0xff]
    %v31 = vld [vmem:[%s2 + $0x30] sm:$0xff]
    %v32 = vld [vmem:[%s2 + $0x38] sm:$0xff]
    %34 = vset.pattern.permute.xlu0 0
    %35 = vperm.xlu0 %34, %v25
    %v36 = vpop.permute.xlu0 %35
    %39 = vset.pattern.permute.xlu0 0
    %40 = vperm.xlu0 %39, %v26
    %v41 = vpop.permute.xlu0 %40
    %44 = vset.pattern.permute.xlu0 0
    %45 = vperm.xlu0 %44, %v27
    %v46 = vpop.permute.xlu0 %45
    %49 = vset.pattern.permute.xlu0 0
    %50 = vperm.xlu0 %49, %v28
    %v51 = vpop.permute.xlu0 %50
    %54 = vset.pattern.permute.xlu0 0
    %55 = vperm.xlu0 %54, %v29
    %v56 = vpop.permute.xlu0 %55
    %59 = vset.pattern.permute.xlu0 0
    %60 = vperm.xlu0 %59, %v30
    %v61 = vpop.permute.xlu0 %60
    %64 = vset.pattern.permute.xlu0 0
    %65 = vperm.xlu0 %64, %v31
    %v66 = vpop.permute.xlu0 %65
    %69 = vset.pattern.permute.xlu0 0
    %70 = vperm.xlu0 %69, %v32
    %v71 = vpop.permute.xlu0 %70
    %vm73 = vcmask 130048
    %v75 = vsel %vm73, %v17, 0
    %v78 = vsel %vm73, %v18, 0
    %v81 = vsel %vm73, %v19, 0
    %v84 = vsel %vm73, %v20, 0
    %v87 = vsel %vm73, %v21, 0
    %v90 = vsel %vm73, %v22, 0
    %v93 = vsel %vm73, %v23, 0
    %v96 = vsel %vm73, %v24, 0
    %98 = vmatprep.subr.mxu0 0.0
    %99 = vmatpush1.msra.mxu0 0.0
    %100 = vmatprep.subr.mxu0 0.0
    %101 = vmatpush1.msra.mxu0 0.0
    %102 = vmatprep.subr.mxu0 0.0
    %103 = vmatpush1.msra.mxu0 0.0
    %104 = vmatprep.subr.mxu0 0.0
    %105 = vmatpush1.msra.mxu0 0.0
    %106 = vmatprep.subr.mxu0 0.0
    %107 = vmatpush1.msra.mxu0 0.0
    %108 = vmatprep.subr.mxu0 0.0
    %109 = vmatpush1.msra.mxu0 0.0
    %110 = vmatprep.subr.mxu0 0.0
    %111 = vmatpush1.msra.mxu0 0.0
    %112 = vmatprep.subr.mxu0 0.0
    %113 = vmatpush1.msra.mxu0 0.0
    %114 = vmatprep.subr.mxu0 0.0
    %115 = vmatpush1.msra.mxu0 0.0
    %116 = vmatprep.subr.mxu0 0.0
    %117 = vmatpush1.msra.mxu0 0.0
    %118 = vmatprep.subr.mxu0 0.0
    %119 = vmatpush1.msra.mxu0 0.0
    %120 = vmatprep.subr.mxu0 0.0
    %121 = vmatpush1.msra.mxu0 0.0
    %122 = vmatprep.subr.mxu0 0.0
    %123 = vmatpush1.msra.mxu0 0.0
    %124 = vmatprep.subr.mxu0 0.0
    %125 = vmatpush1.msra.mxu0 0.0
    %126 = vmatprep.subr.mxu0 0.0
    %127 = vmatpush1.msra.mxu0 %v16
    %128 = vmatprep.subr.mxu0 0.0
    %129 = vmatpush1.msra.mxu0 %v15
    %130 = vmatprep.subr.mxu0 0.0
    %131 = vmatpush2.msra.mxu0 0.0
    %132 = vmatprep.subr.mxu0 0.0
    %133 = vmatpush2.msra.mxu0 0.0
    %134 = vmatprep.subr.mxu0 0.0
    %135 = vmatpush2.msra.mxu0 0.0
    %136 = vmatprep.subr.mxu0 0.0
    %137 = vmatpush2.msra.mxu0 0.0
    %138 = vmatprep.subr.mxu0 0.0
    %139 = vmatpush2.msra.mxu0 0.0
    %140 = vmatprep.subr.mxu0 0.0
    %141 = vmatpush2.msra.mxu0 0.0
    %142 = vmatprep.subr.mxu0 0.0
    %143 = vmatpush2.msra.mxu0 0.0
    %144 = vmatprep.subr.mxu0 0.0
    %145 = vmatpush2.msra.mxu0 0.0
    %146 = vmatprep.subr.mxu0 0.0
    %147 = vmatpush2.msra.mxu0 0.0
    %148 = vmatprep.subr.mxu0 0.0
    %149 = vmatpush2.msra.mxu0 0.0
    %150 = vmatprep.subr.mxu0 0.0
    %151 = vmatpush2.msra.mxu0 0.0
    %152 = vmatprep.subr.mxu0 0.0
    %153 = vmatpush2.msra.mxu0 0.0
    %154 = vmatprep.subr.mxu0 0.0
    %155 = vmatpush2.msra.mxu0 0.0
    %156 = vmatprep.subr.mxu0 0.0
    %157 = vmatpush2.msra.mxu0 0.0
    %158 = vmatprep.subr.mxu0 0.0
    %159 = vmatpush2.msra.mxu0 0.0
    %160 = vmatprep.subr.mxu0 0.0
    %161 = vmatpush2.msra.mxu0 0.0
    %162 = vmatprep.mubr.f32.mxu0 0.0
    %163 = vmatmul.mubr.f32.gmra.mxu0 %v75
    %v164 = vpop.f32.mrf.mxu0
    %v165 = vadd.f32 %v36, %v164
    %v166 = vpop.f32.mrf.mxu0
    %167 = vmatprep.mubr.f32.mxu0 0.0
    %168 = vmatmul.mubr.f32.gmra.mxu0 %v78
    %v169 = vpop.f32.mrf.mxu0
    %v170 = vadd.f32 %v41, %v169
    %v171 = vpop.f32.mrf.mxu0
    %172 = vmatprep.mubr.f32.mxu0 0.0
    %173 = vmatmul.mubr.f32.gmra.mxu0 %v81
    %v174 = vpop.f32.mrf.mxu0
    %v175 = vadd.f32 %v46, %v174
    %v176 = vpop.f32.mrf.mxu0
    %177 = vmatprep.mubr.f32.mxu0 0.0
    %178 = vmatmul.mubr.f32.gmra.mxu0 %v84
    %v179 = vpop.f32.mrf.mxu0
    %v180 = vadd.f32 %v51, %v179
    %v181 = vpop.f32.mrf.mxu0
    %182 = vmatprep.mubr.f32.mxu0 0.0
    %183 = vmatmul.mubr.f32.gmra.mxu0 %v87
    %v184 = vpop.f32.mrf.mxu0
    %v185 = vadd.f32 %v56, %v184
    %v186 = vpop.f32.mrf.mxu0
    %187 = vmatprep.mubr.f32.mxu0 0.0
    %188 = vmatmul.mubr.f32.gmra.mxu0 %v90
    %v189 = vpop.f32.mrf.mxu0
    %v190 = vadd.f32 %v61, %v189
    %v191 = vpop.f32.mrf.mxu0
    %192 = vmatprep.mubr.f32.mxu0 0.0
    %193 = vmatmul.mubr.f32.gmra.mxu0 %v93
    %v194 = vpop.f32.mrf.mxu0
    %v195 = vadd.f32 %v66, %v194
    %v196 = vpop.f32.mrf.mxu0
    %197 = vmatprep.mubr.f32.mxu0 0.0
    %198 = vmatmul.mubr.f32.gmra.mxu0 %v96
    %v199 = vpop.f32.mrf.mxu0
    %v200 = vadd.f32 %v71, %v199
    %v201 = vpop.f32.mrf.mxu0
    %202 = vdwg.mxu0
    %v203 = vld [vmem:[%s2] sm:$0xff]
    %v204 = vld [vmem:[%s2 + $0x8] sm:$0xff]
    %v205 = vld [vmem:[%s2 + $0x10] sm:$0xff]
    %v206 = vld [vmem:[%s2 + $0x18] sm:$0xff]
    %v207 = vadd.f32 %v165, %v170
    %v208 = vadd.f32 %v207, %v175
    %v209 = vadd.f32 %v208, %v180
    %v210 = vrot.slane %v209, 4
    %v211 = vadd.f32 %v209, %v210
    %v212 = vrot.slane %v211, 2
    %v213 = vadd.f32 %v211, %v212
    %v214 = vrot.slane %v213, 1
    %v215 = vadd.f32 %v213, %v214
    %v216 = vrcp.pop 32.0
    %v217 = vmul.f32 %v215, %v216
    %v218 = vsub.f32 %v165, %v217
    %v219 = vsub.f32 %v170, %v217
    %v220 = vsub.f32 %v175, %v217
    %v221 = vsub.f32 %v180, %v217
    %v222 = vmul.f32 %v218, %v218
    %v223 = vmul.f32 %v219, %v219
    %v224 = vmul.f32 %v220, %v220
    %v225 = vmul.f32 %v221, %v221
    %v226 = vadd.f32 %v222, %v223
    %v227 = vadd.f32 %v226, %v224
    %v228 = vadd.f32 %v227, %v225
    %v229 = vrot.slane %v228, 4
    %v230 = vadd.f32 %v228, %v229
    %v231 = vrot.slane %v230, 2
    %v232 = vadd.f32 %v230, %v231
    %v233 = vrot.slane %v232, 1
    %v234 = vadd.f32 %v232, %v233
    %v235 = vmul.f32 %v234, %v216
    %v236 = vadd.f32 %v235, 1e-05
    %v237 = vrsqrt.pop %v236
    %v238 = vmul.f32 %v218, %v237
    %v239 = vmul.f32 %v219, %v237
    %v240 = vmul.f32 %v220, %v237
    %v241 = vmul.f32 %v221, %v237
    %243 = vset.pattern.permute.xlu0 1
    %244 = vperm.xlu0 %243, %v203
    %v245 = vpop.permute.xlu0 %244
    %248 = vset.pattern.permute.xlu0 1
    %249 = vperm.xlu0 %248, %v204
    %v250 = vpop.permute.xlu0 %249
    %253 = vset.pattern.permute.xlu0 1
    %254 = vperm.xlu0 %253, %v205
    %v255 = vpop.permute.xlu0 %254
    %258 = vset.pattern.permute.xlu0 1
    %259 = vperm.xlu0 %258, %v206
    %v260 = vpop.permute.xlu0 %259
    %v262 = vmul.f32 %v238, %v245
    %v263 = vmul.f32 %v239, %v250
    %v264 = vmul.f32 %v240, %v255
    %v265 = vmul.f32 %v241, %v260
    %266 = vset.pattern.permute.xlu0 2
    %267 = vperm.xlu0 %266, %v203
    %v268 = vpop.permute.xlu0 %267
    %270 = vset.pattern.permute.xlu0 2
    %271 = vperm.xlu0 %270, %v204
    %v272 = vpop.permute.xlu0 %271
    %274 = vset.pattern.permute.xlu0 2
    %275 = vperm.xlu0 %274, %v205
    %v276 = vpop.permute.xlu0 %275
    %278 = vset.pattern.permute.xlu0 2
    %279 = vperm.xlu0 %278, %v206
    %v280 = vpop.permute.xlu0 %279
    %v282 = vadd.f32 %v262, %v268
    %v283 = vadd.f32 %v263, %v272
    %v284 = vadd.f32 %v264, %v276
    %v285 = vadd.f32 %v265, %v280
    %v286 = vmax.f32 %v282, 0.0
    %v287 = vmax.f32 %v283, 0.0
    %v288 = vmax.f32 %v284, 0.0
    %v289 = vmax.f32 %v285, 0.0
    %v290 = vadd.f32 %v185, %v190
    %v291 = vadd.f32 %v290, %v195
    %v292 = vadd.f32 %v291, %v200
    %v293 = vrot.slane %v292, 4
    %v294 = vadd.f32 %v292, %v293
    %v295 = vrot.slane %v294, 2
    %v296 = vadd.f32 %v294, %v295
    %v297 = vrot.slane %v296, 1
    %v298 = vadd.f32 %v296, %v297
    %v299 = vmul.f32 %v298, %v216
    %v300 = vsub.f32 %v185, %v299
    %v301 = vsub.f32 %v190, %v299
    %v302 = vsub.f32 %v195, %v299
    %v303 = vsub.f32 %v200, %v299
    %v304 = vmul.f32 %v300, %v300
    %v305 = vmul.f32 %v301, %v301
    %v306 = vmul.f32 %v302, %v302
    %v307 = vmul.f32 %v303, %v303
    %v308 = vadd.f32 %v304, %v305
    %v309 = vadd.f32 %v308, %v306
    %v310 = vadd.f32 %v309, %v307
    %v311 = vrot.slane %v310, 4
    %v312 = vadd.f32 %v310, %v311
    %v313 = vrot.slane %v312, 2
    %v314 = vadd.f32 %v312, %v313
    %v315 = vrot.slane %v314, 1
    %v316 = vadd.f32 %v314, %v315
    %v317 = vmul.f32 %v316, %v216
    %v318 = vadd.f32 %v317, 1e-05
    %v319 = vrsqrt.pop %v318
    %v320 = vmul.f32 %v300, %v319
    %v321 = vmul.f32 %v301, %v319
    %v322 = vmul.f32 %v302, %v319
    %v323 = vmul.f32 %v303, %v319
    %324 = vset.pattern.permute.xlu0 6
    %325 = vperm.xlu0 %324, %v203
    %v326 = vpop.permute.xlu0 %325
    %328 = vset.pattern.permute.xlu0 6
    %329 = vperm.xlu0 %328, %v204
    %v330 = vpop.permute.xlu0 %329
    %332 = vset.pattern.permute.xlu0 6
    %333 = vperm.xlu0 %332, %v205
    %v334 = vpop.permute.xlu0 %333
    %336 = vset.pattern.permute.xlu0 6
    %337 = vperm.xlu0 %336, %v206
    %v338 = vpop.permute.xlu0 %337
    %v340 = vmul.f32 %v320, %v326
    %v341 = vmul.f32 %v321, %v330
    %v342 = vmul.f32 %v322, %v334
    %v343 = vmul.f32 %v323, %v338
    %344 = vset.pattern.permute.xlu0 7
    %345 = vperm.xlu0 %344, %v203
    %v346 = vpop.permute.xlu0 %345
    %348 = vset.pattern.permute.xlu0 7
    %349 = vperm.xlu0 %348, %v204
    %v350 = vpop.permute.xlu0 %349
    %352 = vset.pattern.permute.xlu0 7
    %353 = vperm.xlu0 %352, %v205
    %v354 = vpop.permute.xlu0 %353
    %356 = vset.pattern.permute.xlu0 7
    %357 = vperm.xlu0 %356, %v206
    %v358 = vpop.permute.xlu0 %357
    %v360 = vadd.f32 %v340, %v346
    %v361 = vadd.f32 %v341, %v350
    %v362 = vadd.f32 %v342, %v354
    %v363 = vadd.f32 %v343, %v358
    %s364 = scalar_lea.vmem %s1, 192
    %v365 = vld [vmem:[%s364] sm:$0xff]
    %v366 = vld [vmem:[%s364 + $0x8] sm:$0xff]
    %v367 = vld [vmem:[%s364 + $0x10] sm:$0xff]
    %v368 = vld [vmem:[%s364 + $0x18] sm:$0xff]
    %369 = vset.pattern.permute.xlu0 3
    %370 = vperm.xlu0 %369, %v203
    %v371 = vpop.permute.xlu0 %370
    %373 = vset.pattern.permute.xlu0 3
    %374 = vperm.xlu0 %373, %v204
    %v375 = vpop.permute.xlu0 %374
    %377 = vset.pattern.permute.xlu0 3
    %378 = vperm.xlu0 %377, %v205
    %v379 = vpop.permute.xlu0 %378
    %381 = vset.pattern.permute.xlu0 3
    %382 = vperm.xlu0 %381, %v206
    %v383 = vpop.permute.xlu0 %382
    %vm385 = vcmask 261120
    %v387 = vsel %vm385, %v365, 0
    %v390 = vsel %vm385, %v366, 0
    %v393 = vsel %vm385, %v367, 0
    %v396 = vsel %vm385, %v368, 0
    %398 = vmatprep.subr.mxu0 0.0
    %399 = vmatpush1.msra.mxu0 0.0
    %400 = vmatprep.subr.mxu0 0.0
    %401 = vmatpush1.msra.mxu0 0.0
    %402 = vmatprep.subr.mxu0 0.0
    %403 = vmatpush1.msra.mxu0 0.0
    %404 = vmatprep.subr.mxu0 0.0
    %405 = vmatpush1.msra.mxu0 0.0
    %406 = vmatprep.subr.mxu0 0.0
    %407 = vmatpush1.msra.mxu0 0.0
    %408 = vmatprep.subr.mxu0 0.0
    %409 = vmatpush1.msra.mxu0 0.0
    %410 = vmatprep.subr.mxu0 0.0
    %411 = vmatpush1.msra.mxu0 0.0
    %412 = vmatprep.subr.mxu0 0.0
    %413 = vmatpush1.msra.mxu0 0.0
    %414 = vmatprep.subr.mxu0 0.0
    %415 = vmatpush1.msra.mxu0 0.0
    %416 = vmatprep.subr.mxu0 0.0
    %417 = vmatpush1.msra.mxu0 0.0
    %418 = vmatprep.subr.mxu0 0.0
    %419 = vmatpush1.msra.mxu0 0.0
    %420 = vmatprep.subr.mxu0 0.0
    %421 = vmatpush1.msra.mxu0 0.0
    %422 = vmatprep.subr.mxu0 0.0
    %423 = vmatpush1.msra.mxu0 %v289
    %424 = vmatprep.subr.mxu0 0.0
    %425 = vmatpush1.msra.mxu0 %v288
    %426 = vmatprep.subr.mxu0 0.0
    %427 = vmatpush1.msra.mxu0 %v287
    %428 = vmatprep.subr.mxu0 0.0
    %429 = vmatpush1.msra.mxu0 %v286
    %430 = vmatprep.subr.mxu0 0.0
    %431 = vmatpush2.msra.mxu0 0.0
    %432 = vmatprep.subr.mxu0 0.0
    %433 = vmatpush2.msra.mxu0 0.0
    %434 = vmatprep.subr.mxu0 0.0
    %435 = vmatpush2.msra.mxu0 0.0
    %436 = vmatprep.subr.mxu0 0.0
    %437 = vmatpush2.msra.mxu0 0.0
    %438 = vmatprep.subr.mxu0 0.0
    %439 = vmatpush2.msra.mxu0 0.0
    %440 = vmatprep.subr.mxu0 0.0
    %441 = vmatpush2.msra.mxu0 0.0
    %442 = vmatprep.subr.mxu0 0.0
    %443 = vmatpush2.msra.mxu0 0.0
    %444 = vmatprep.subr.mxu0 0.0
    %445 = vmatpush2.msra.mxu0 0.0
    %446 = vmatprep.subr.mxu0 0.0
    %447 = vmatpush2.msra.mxu0 0.0
    %448 = vmatprep.subr.mxu0 0.0
    %449 = vmatpush2.msra.mxu0 0.0
    %450 = vmatprep.subr.mxu0 0.0
    %451 = vmatpush2.msra.mxu0 0.0
    %452 = vmatprep.subr.mxu0 0.0
    %453 = vmatpush2.msra.mxu0 0.0
    %454 = vmatprep.subr.mxu0 0.0
    %455 = vmatpush2.msra.mxu0 0.0
    %456 = vmatprep.subr.mxu0 0.0
    %457 = vmatpush2.msra.mxu0 0.0
    %458 = vmatprep.subr.mxu0 0.0
    %459 = vmatpush2.msra.mxu0 0.0
    %460 = vmatprep.subr.mxu0 0.0
    %461 = vmatpush2.msra.mxu0 0.0
    %462 = vmatprep.mubr.f32.mxu0 0.0
    %463 = vmatmul.mubr.f32.gmra.mxu0 %v387
    %v464 = vpop.f32.mrf.mxu0
    %v465 = vadd.f32 %v371, %v464
    %v466 = vpop.f32.mrf.mxu0
    %467 = vmatprep.mubr.f32.mxu0 0.0
    %468 = vmatmul.mubr.f32.gmra.mxu0 %v390
    %v469 = vpop.f32.mrf.mxu0
    %v470 = vadd.f32 %v375, %v469
    %v471 = vpop.f32.mrf.mxu0
    %472 = vmatprep.mubr.f32.mxu0 0.0
    %473 = vmatmul.mubr.f32.gmra.mxu0 %v393
    %v474 = vpop.f32.mrf.mxu0
    %v475 = vadd.f32 %v379, %v474
    %v476 = vpop.f32.mrf.mxu0
    %477 = vmatprep.mubr.f32.mxu0 0.0
    %478 = vmatmul.mubr.f32.gmra.mxu0 %v396
    %v479 = vpop.f32.mrf.mxu0
    %v480 = vadd.f32 %v383, %v479
    %v481 = vpop.f32.mrf.mxu0
    %482 = vdwg.mxu0
    %v483 = vadd.f32 %v465, %v470
    %v484 = vadd.f32 %v483, %v475
    %v485 = vadd.f32 %v484, %v480
    %v486 = vrot.slane %v485, 4
    %v487 = vadd.f32 %v485, %v486
    %v488 = vrot.slane %v487, 2
    %v489 = vadd.f32 %v487, %v488
    %v490 = vrot.slane %v489, 1
    %v491 = vadd.f32 %v489, %v490
    %v492 = vmul.f32 %v491, %v216
    %v493 = vsub.f32 %v465, %v492
    %v494 = vsub.f32 %v470, %v492
    %v495 = vsub.f32 %v475, %v492
    %v496 = vsub.f32 %v480, %v492
    %v497 = vmul.f32 %v493, %v493
    %v498 = vmul.f32 %v494, %v494
    %v499 = vmul.f32 %v495, %v495
    %v500 = vmul.f32 %v496, %v496
    %v501 = vadd.f32 %v497, %v498
    %v502 = vadd.f32 %v501, %v499
    %v503 = vadd.f32 %v502, %v500
    %v504 = vrot.slane %v503, 4
    %v505 = vadd.f32 %v503, %v504
    %v506 = vrot.slane %v505, 2
    %v507 = vadd.f32 %v505, %v506
    %v508 = vrot.slane %v507, 1
    %v509 = vadd.f32 %v507, %v508
    %v510 = vmul.f32 %v509, %v216
    %v511 = vadd.f32 %v510, 1e-05
    %v512 = vrsqrt.pop %v511
    %v513 = vmul.f32 %v493, %v512
    %v514 = vmul.f32 %v494, %v512
    %v515 = vmul.f32 %v495, %v512
    %v516 = vmul.f32 %v496, %v512
    %517 = vset.pattern.permute.xlu0 4
    %518 = vperm.xlu0 %517, %v203
    %v519 = vpop.permute.xlu0 %518
    %521 = vset.pattern.permute.xlu0 4
    %522 = vperm.xlu0 %521, %v204
    %v523 = vpop.permute.xlu0 %522
    %525 = vset.pattern.permute.xlu0 4
    %526 = vperm.xlu0 %525, %v205
    %v527 = vpop.permute.xlu0 %526
    %529 = vset.pattern.permute.xlu0 4
    %530 = vperm.xlu0 %529, %v206
    %v531 = vpop.permute.xlu0 %530
    %v533 = vmul.f32 %v513, %v519
    %v534 = vmul.f32 %v514, %v523
    %v535 = vmul.f32 %v515, %v527
    %v536 = vmul.f32 %v516, %v531
    %537 = vset.pattern.permute.xlu0 5
    %538 = vperm.xlu0 %537, %v203
    %v539 = vpop.permute.xlu0 %538
    %541 = vset.pattern.permute.xlu0 5
    %542 = vperm.xlu0 %541, %v204
    %v543 = vpop.permute.xlu0 %542
    %545 = vset.pattern.permute.xlu0 5
    %546 = vperm.xlu0 %545, %v205
    %v547 = vpop.permute.xlu0 %546
    %549 = vset.pattern.permute.xlu0 5
    %550 = vperm.xlu0 %549, %v206
    %v551 = vpop.permute.xlu0 %550
    %v553 = vadd.f32 %v533, %v539
    %v554 = vadd.f32 %v534, %v543
    %v555 = vadd.f32 %v535, %v547
    %v556 = vadd.f32 %v536, %v551
    %v557 = vadd.f32 %v553, %v360
    %v558 = vadd.f32 %v554, %v361
    %v559 = vadd.f32 %v555, %v362
    %v560 = vadd.f32 %v556, %v363
    %v561 = vmax.f32 %v557, 0.0
    %v562 = vmax.f32 %v558, 0.0
    %v563 = vmax.f32 %v559, 0.0
    %v564 = vmax.f32 %v560, 0.0
    %s565 = scalar_lea.vmem %s1, 64
    %v566 = vld [vmem:[%s565] sm:$0xff]
    %v567 = vld [vmem:[%s565 + $0x8] sm:$0xff]
    %v568 = vld [vmem:[%s565 + $0x10] sm:$0xff]
    %v569 = vld [vmem:[%s565 + $0x18] sm:$0xff]
    %570 = vset.pattern.permute.xlu0 8
    %571 = vperm.xlu0 %570, %v203
    %v572 = vpop.permute.xlu0 %571
    %574 = vset.pattern.permute.xlu0 8
    %575 = vperm.xlu0 %574, %v204
    %v576 = vpop.permute.xlu0 %575
    %578 = vset.pattern.permute.xlu0 8
    %579 = vperm.xlu0 %578, %v205
    %v580 = vpop.permute.xlu0 %579
    %582 = vset.pattern.permute.xlu0 8
    %583 = vperm.xlu0 %582, %v206
    %v584 = vpop.permute.xlu0 %583
    %v587 = vsel %vm385, %v566, 0
    %v590 = vsel %vm385, %v567, 0
    %v593 = vsel %vm385, %v568, 0
    %v596 = vsel %vm385, %v569, 0
    %598 = vmatprep.subr.mxu0 0.0
    %599 = vmatpush1.msra.mxu0 0.0
    %600 = vmatprep.subr.mxu0 0.0
    %601 = vmatpush1.msra.mxu0 0.0
    %602 = vmatprep.subr.mxu0 0.0
    %603 = vmatpush1.msra.mxu0 0.0
    %604 = vmatprep.subr.mxu0 0.0
    %605 = vmatpush1.msra.mxu0 0.0
    %606 = vmatprep.subr.mxu0 0.0
    %607 = vmatpush1.msra.mxu0 0.0
    %608 = vmatprep.subr.mxu0 0.0
    %609 = vmatpush1.msra.mxu0 0.0
    %610 = vmatprep.subr.mxu0 0.0
    %611 = vmatpush1.msra.mxu0 0.0
    %612 = vmatprep.subr.mxu0 0.0
    %613 = vmatpush1.msra.mxu0 0.0
    %614 = vmatprep.subr.mxu0 0.0
    %615 = vmatpush1.msra.mxu0 0.0
    %616 = vmatprep.subr.mxu0 0.0
    %617 = vmatpush1.msra.mxu0 0.0
    %618 = vmatprep.subr.mxu0 0.0
    %619 = vmatpush1.msra.mxu0 0.0
    %620 = vmatprep.subr.mxu0 0.0
    %621 = vmatpush1.msra.mxu0 0.0
    %622 = vmatprep.subr.mxu0 0.0
    %623 = vmatpush1.msra.mxu0 %v564
    %624 = vmatprep.subr.mxu0 0.0
    %625 = vmatpush1.msra.mxu0 %v563
    %626 = vmatprep.subr.mxu0 0.0
    %627 = vmatpush1.msra.mxu0 %v562
    %628 = vmatprep.subr.mxu0 0.0
    %629 = vmatpush1.msra.mxu0 %v561
    %630 = vmatprep.subr.mxu0 0.0
    %631 = vmatpush2.msra.mxu0 0.0
    %632 = vmatprep.subr.mxu0 0.0
    %633 = vmatpush2.msra.mxu0 0.0
    %634 = vmatprep.subr.mxu0 0.0
    %635 = vmatpush2.msra.mxu0 0.0
    %636 = vmatprep.subr.mxu0 0.0
    %637 = vmatpush2.msra.mxu0 0.0
    %638 = vmatprep.subr.mxu0 0.0
    %639 = vmatpush2.msra.mxu0 0.0
    %640 = vmatprep.subr.mxu0 0.0
    %641 = vmatpush2.msra.mxu0 0.0
    %642 = vmatprep.subr.mxu0 0.0
    %643 = vmatpush2.msra.mxu0 0.0
    %644 = vmatprep.subr.mxu0 0.0
    %645 = vmatpush2.msra.mxu0 0.0
    %646 = vmatprep.subr.mxu0 0.0
    %647 = vmatpush2.msra.mxu0 0.0
    %648 = vmatprep.subr.mxu0 0.0
    %649 = vmatpush2.msra.mxu0 0.0
    %650 = vmatprep.subr.mxu0 0.0
    %651 = vmatpush2.msra.mxu0 0.0
    %652 = vmatprep.subr.mxu0 0.0
    %653 = vmatpush2.msra.mxu0 0.0
    %654 = vmatprep.subr.mxu0 0.0
    %655 = vmatpush2.msra.mxu0 0.0
    %656 = vmatprep.subr.mxu0 0.0
    %657 = vmatpush2.msra.mxu0 0.0
    %658 = vmatprep.subr.mxu0 0.0
    %659 = vmatpush2.msra.mxu0 0.0
    %660 = vmatprep.subr.mxu0 0.0
    %661 = vmatpush2.msra.mxu0 0.0
    %662 = vmatprep.mubr.f32.mxu0 0.0
    %663 = vmatmul.mubr.f32.gmra.mxu0 %v587
    %v664 = vpop.f32.mrf.mxu0
    %v665 = vadd.f32 %v572, %v664
    %v666 = vpop.f32.mrf.mxu0
    %667 = vmatprep.mubr.f32.mxu0 0.0
    %668 = vmatmul.mubr.f32.gmra.mxu0 %v590
    %v669 = vpop.f32.mrf.mxu0
    %v670 = vadd.f32 %v576, %v669
    %v671 = vpop.f32.mrf.mxu0
    %672 = vmatprep.mubr.f32.mxu0 0.0
    %673 = vmatmul.mubr.f32.gmra.mxu0 %v593
    %v674 = vpop.f32.mrf.mxu0
    %v675 = vadd.f32 %v580, %v674
    %v676 = vpop.f32.mrf.mxu0
    %677 = vmatprep.mubr.f32.mxu0 0.0
    %678 = vmatmul.mubr.f32.gmra.mxu0 %v596
    %v679 = vpop.f32.mrf.mxu0
    %v680 = vadd.f32 %v584, %v679
    %v681 = vpop.f32.mrf.mxu0
    %682 = vdwg.mxu0
    %v683 = vld [vmem:[%s2] sm:$0xff]
    %v684 = vld [vmem:[%s2 + $0x8] sm:$0xff]
    %v685 = vadd.f32 %v665, %v670
    %v686 = vrot.slane %v685, 4
    %v687 = vadd.f32 %v685, %v686
    %v688 = vrot.slane %v687, 2
    %v689 = vadd.f32 %v687, %v688
    %v690 = vrot.slane %v689, 1
    %v691 = vadd.f32 %v689, %v690
    %v692 = vrcp.pop 16.0
    %v693 = vmul.f32 %v691, %v692
    %v694 = vsub.f32 %v665, %v693
    %v695 = vsub.f32 %v670, %v693
    %v696 = vmul.f32 %v694, %v694
    %v697 = vmul.f32 %v695, %v695
    %v698 = vadd.f32 %v696, %v697
    %v699 = vrot.slane %v698, 4
    %v700 = vadd.f32 %v698, %v699
    %v701 = vrot.slane %v700, 2
    %v702 = vadd.f32 %v700, %v701
    %v703 = vrot.slane %v702, 1
    %v704 = vadd.f32 %v702, %v703
    %v705 = vmul.f32 %v704, %v692
    %v706 = vadd.f32 %v705, 1e-05
    %v707 = vrsqrt.pop %v706
    %v708 = vmul.f32 %v694, %v707
    %v709 = vmul.f32 %v695, %v707
    %711 = vset.pattern.permute.xlu0 9
    %712 = vperm.xlu0 %711, %v683
    %v713 = vpop.permute.xlu0 %712
    %716 = vset.pattern.permute.xlu0 9
    %717 = vperm.xlu0 %716, %v684
    %v718 = vpop.permute.xlu0 %717
    %v720 = vmul.f32 %v708, %v713
    %v721 = vmul.f32 %v709, %v718
    %722 = vset.pattern.permute.xlu0 10
    %723 = vperm.xlu0 %722, %v683
    %v724 = vpop.permute.xlu0 %723
    %726 = vset.pattern.permute.xlu0 10
    %727 = vperm.xlu0 %726, %v684
    %v728 = vpop.permute.xlu0 %727
    %v730 = vadd.f32 %v720, %v724
    %v731 = vadd.f32 %v721, %v728
    %v732 = vmax.f32 %v730, 0.0
    %v733 = vmax.f32 %v731, 0.0
    %v734 = vadd.f32 %v675, %v680
    %v735 = vrot.slane %v734, 4
    %v736 = vadd.f32 %v734, %v735
    %v737 = vrot.slane %v736, 2
    %v738 = vadd.f32 %v736, %v737
    %v739 = vrot.slane %v738, 1
    %v740 = vadd.f32 %v738, %v739
    %v741 = vmul.f32 %v740, %v692
    %v742 = vsub.f32 %v675, %v741
    %v743 = vsub.f32 %v680, %v741
    %v744 = vmul.f32 %v742, %v742
    %v745 = vmul.f32 %v743, %v743
    %v746 = vadd.f32 %v744, %v745
    %v747 = vrot.slane %v746, 4
    %v748 = vadd.f32 %v746, %v747
    %v749 = vrot.slane %v748, 2
    %v750 = vadd.f32 %v748, %v749
    %v751 = vrot.slane %v750, 1
    %v752 = vadd.f32 %v750, %v751
    %v753 = vmul.f32 %v752, %v692
    %v754 = vadd.f32 %v753, 1e-05
    %v755 = vrsqrt.pop %v754
    %v756 = vmul.f32 %v742, %v755
    %v757 = vmul.f32 %v743, %v755
    %758 = vset.pattern.permute.xlu0 14
    %759 = vperm.xlu0 %758, %v683
    %v760 = vpop.permute.xlu0 %759
    %762 = vset.pattern.permute.xlu0 14
    %763 = vperm.xlu0 %762, %v684
    %v764 = vpop.permute.xlu0 %763
    %v766 = vmul.f32 %v756, %v760
    %v767 = vmul.f32 %v757, %v764
    %768 = vset.pattern.permute.xlu0 15
    %769 = vperm.xlu0 %768, %v683
    %v770 = vpop.permute.xlu0 %769
    %772 = vset.pattern.permute.xlu0 15
    %773 = vperm.xlu0 %772, %v684
    %v774 = vpop.permute.xlu0 %773
    %v776 = vadd.f32 %v766, %v770
    %v777 = vadd.f32 %v767, %v774
    %s778 = scalar_lea.vmem %s1, 256
    %v779 = vld [vmem:[%s778] sm:$0xff]
    %v780 = vld [vmem:[%s778 + $0x8] sm:$0xff]
    %781 = vset.pattern.permute.xlu0 11
    %782 = vperm.xlu0 %781, %v683
    %v783 = vpop.permute.xlu0 %782
    %785 = vset.pattern.permute.xlu0 11
    %786 = vperm.xlu0 %785, %v684
    %v787 = vpop.permute.xlu0 %786
    %v790 = vsel %vm73, %v779, 0
    %v793 = vsel %vm73, %v780, 0
    %795 = vmatprep.subr.mxu0 0.0
    %796 = vmatpush1.msra.mxu0 0.0
    %797 = vmatprep.subr.mxu0 0.0
    %798 = vmatpush1.msra.mxu0 0.0
    %799 = vmatprep.subr.mxu0 0.0
    %800 = vmatpush1.msra.mxu0 0.0
    %801 = vmatprep.subr.mxu0 0.0
    %802 = vmatpush1.msra.mxu0 0.0
    %803 = vmatprep.subr.mxu0 0.0
    %804 = vmatpush1.msra.mxu0 0.0
    %805 = vmatprep.subr.mxu0 0.0
    %806 = vmatpush1.msra.mxu0 0.0
    %807 = vmatprep.subr.mxu0 0.0
    %808 = vmatpush1.msra.mxu0 0.0
    %809 = vmatprep.subr.mxu0 0.0
    %810 = vmatpush1.msra.mxu0 0.0
    %811 = vmatprep.subr.mxu0 0.0
    %812 = vmatpush1.msra.mxu0 0.0
    %813 = vmatprep.subr.mxu0 0.0
    %814 = vmatpush1.msra.mxu0 0.0
    %815 = vmatprep.subr.mxu0 0.0
    %816 = vmatpush1.msra.mxu0 0.0
    %817 = vmatprep.subr.mxu0 0.0
    %818 = vmatpush1.msra.mxu0 0.0
    %819 = vmatprep.subr.mxu0 0.0
    %820 = vmatpush1.msra.mxu0 0.0
    %821 = vmatprep.subr.mxu0 0.0
    %822 = vmatpush1.msra.mxu0 0.0
    %823 = vmatprep.subr.mxu0 0.0
    %824 = vmatpush1.msra.mxu0 %v733
    %825 = vmatprep.subr.mxu0 0.0
    %826 = vmatpush1.msra.mxu0 %v732
    %827 = vmatprep.subr.mxu0 0.0
    %828 = vmatpush2.msra.mxu0 0.0
    %829 = vmatprep.subr.mxu0 0.0
    %830 = vmatpush2.msra.mxu0 0.0
    %831 = vmatprep.subr.mxu0 0.0
    %832 = vmatpush2.msra.mxu0 0.0
    %833 = vmatprep.subr.mxu0 0.0
    %834 = vmatpush2.msra.mxu0 0.0
    %835 = vmatprep.subr.mxu0 0.0
    %836 = vmatpush2.msra.mxu0 0.0
    %837 = vmatprep.subr.mxu0 0.0
    %838 = vmatpush2.msra.mxu0 0.0
    %839 = vmatprep.subr.mxu0 0.0
    %840 = vmatpush2.msra.mxu0 0.0
    %841 = vmatprep.subr.mxu0 0.0
    %842 = vmatpush2.msra.mxu0 0.0
    %843 = vmatprep.subr.mxu0 0.0
    %844 = vmatpush2.msra.mxu0 0.0
    %845 = vmatprep.subr.mxu0 0.0
    %846 = vmatpush2.msra.mxu0 0.0
    %847 = vmatprep.subr.mxu0 0.0
    %848 = vmatpush2.msra.mxu0 0.0
    %849 = vmatprep.subr.mxu0 0.0
    %850 = vmatpush2.msra.mxu0 0.0
    %851 = vmatprep.subr.mxu0 0.0
    %852 = vmatpush2.msra.mxu0 0.0
    %853 = vmatprep.subr.mxu0 0.0
    %854 = vmatpush2.msra.mxu0 0.0
    %855 = vmatprep.subr.mxu0 0.0
    %856 = vmatpush2.msra.mxu0 0.0
    %857 = vmatprep.subr.mxu0 0.0
    %858 = vmatpush2.msra.mxu0 0.0
    %859 = vmatprep.mubr.f32.mxu0 0.0
    %860 = vmatmul.mubr.f32.gmra.mxu0 %v790
    %v861 = vpop.f32.mrf.mxu0
    %v862 = vadd.f32 %v783, %v861
    %v863 = vpop.f32.mrf.mxu0
    %864 = vmatprep.mubr.f32.mxu0 0.0
    %865 = vmatmul.mubr.f32.gmra.mxu0 %v793
    %v866 = vpop.f32.mrf.mxu0
    %v867 = vadd.f32 %v787, %v866
    %v868 = vpop.f32.mrf.mxu0
    %869 = vdwg.mxu0
    %v870 = vadd.f32 %v862, %v867
    %v871 = vrot.slane %v870, 4
    %v872 = vadd.f32 %v870, %v871
    %v873 = vrot.slane %v872, 2
    %v874 = vadd.f32 %v872, %v873
    %v875 = vrot.slane %v874, 1
    %v876 = vadd.f32 %v874, %v875
    %v877 = vmul.f32 %v876, %v692
    %v878 = vsub.f32 %v862, %v877
    %v879 = vsub.f32 %v867, %v877
    %v880 = vmul.f32 %v878, %v878
    %v881 = vmul.f32 %v879, %v879
    %v882 = vadd.f32 %v880, %v881
    %v883 = vrot.slane %v882, 4
    %v884 = vadd.f32 %v882, %v883
    %v885 = vrot.slane %v884, 2
    %v886 = vadd.f32 %v884, %v885
    %v887 = vrot.slane %v886, 1
    %v888 = vadd.f32 %v886, %v887
    %v889 = vmul.f32 %v888, %v692
    %v890 = vadd.f32 %v889, 1e-05
    %v891 = vrsqrt.pop %v890
    %v892 = vmul.f32 %v878, %v891
    %v893 = vmul.f32 %v879, %v891
    %894 = vset.pattern.permute.xlu0 12
    %895 = vperm.xlu0 %894, %v683
    %v896 = vpop.permute.xlu0 %895
    %898 = vset.pattern.permute.xlu0 12
    %899 = vperm.xlu0 %898, %v684
    %v900 = vpop.permute.xlu0 %899
    %v902 = vmul.f32 %v892, %v896
    %v903 = vmul.f32 %v893, %v900
    %904 = vset.pattern.permute.xlu0 13
    %905 = vperm.xlu0 %904, %v683
    %v906 = vpop.permute.xlu0 %905
    %908 = vset.pattern.permute.xlu0 13
    %909 = vperm.xlu0 %908, %v684
    %v910 = vpop.permute.xlu0 %909
    %v912 = vadd.f32 %v902, %v906
    %v913 = vadd.f32 %v903, %v910
    %v914 = vadd.f32 %v912, %v776
    %v915 = vadd.f32 %v913, %v777
    %v916 = vmax.f32 %v914, 0.0
    %v917 = vmax.f32 %v915, 0.0
    %s918 = scalar_lea.vmem %s1, 128
    %v919 = vld [vmem:[%s918] sm:$0xff]
    %v920 = vld [vmem:[%s2] sm:$0xff]
    %922 = vset.pattern.permute.xlu0 16
    %923 = vperm.xlu0 %922, %v920
    %v924 = vpop.permute.xlu0 %923
    %v927 = vsel %vm73, %v919, 0
    %929 = vmatprep.subr.mxu0 0.0
    %930 = vmatpush1.msra.mxu0 0.0
    %931 = vmatprep.subr.mxu0 0.0
    %932 = vmatpush1.msra.mxu0 0.0
    %933 = vmatprep.subr.mxu0 0.0
    %934 = vmatpush1.msra.mxu0 0.0
    %935 = vmatprep.subr.mxu0 0.0
    %936 = vmatpush1.msra.mxu0 0.0
    %937 = vmatprep.subr.mxu0 0.0
    %938 = vmatpush1.msra.mxu0 0.0
    %939 = vmatprep.subr.mxu0 0.0
    %940 = vmatpush1.msra.mxu0 0.0
    %941 = vmatprep.subr.mxu0 0.0
    %942 = vmatpush1.msra.mxu0 0.0
    %943 = vmatprep.subr.mxu0 0.0
    %944 = vmatpush1.msra.mxu0 0.0
    %945 = vmatprep.subr.mxu0 0.0
    %946 = vmatpush1.msra.mxu0 0.0
    %947 = vmatprep.subr.mxu0 0.0
    %948 = vmatpush1.msra.mxu0 0.0
    %949 = vmatprep.subr.mxu0 0.0
    %950 = vmatpush1.msra.mxu0 0.0
    %951 = vmatprep.subr.mxu0 0.0
    %952 = vmatpush1.msra.mxu0 0.0
    %953 = vmatprep.subr.mxu0 0.0
    %954 = vmatpush1.msra.mxu0 0.0
    %955 = vmatprep.subr.mxu0 0.0
    %956 = vmatpush1.msra.mxu0 0.0
    %957 = vmatprep.subr.mxu0 0.0
    %958 = vmatpush1.msra.mxu0 %v917
    %959 = vmatprep.subr.mxu0 0.0
    %960 = vmatpush1.msra.mxu0 %v916
    %961 = vmatprep.subr.mxu0 0.0
    %962 = vmatpush2.msra.mxu0 0.0
    %963 = vmatprep.subr.mxu0 0.0
    %964 = vmatpush2.msra.mxu0 0.0
    %965 = vmatprep.subr.mxu0 0.0
    %966 = vmatpush2.msra.mxu0 0.0
    %967 = vmatprep.subr.mxu0 0.0
    %968 = vmatpush2.msra.mxu0 0.0
    %969 = vmatprep.subr.mxu0 0.0
    %970 = vmatpush2.msra.mxu0 0.0
    %971 = vmatprep.subr.mxu0 0.0
    %972 = vmatpush2.msra.mxu0 0.0
    %973 = vmatprep.subr.mxu0 0.0
    %974 = vmatpush2.msra.mxu0 0.0
    %975 = vmatprep.subr.mxu0 0.0
    %976 = vmatpush2.msra.mxu0 0.0
    %977 = vmatprep.subr.mxu0 0.0
    %978 = vmatpush2.msra.mxu0 0.0
    %979 = vmatprep.subr.mxu0 0.0
    %980 = vmatpush2.msra.mxu0 0.0
    %981 = vmatprep.subr.mxu0 0.0
    %982 = vmatpush2.msra.mxu0 0.0
    %983 = vmatprep.subr.mxu0 0.0
    %984 = vmatpush2.msra.mxu0 0.0
    %985 = vmatprep.subr.mxu0 0.0
    %986 = vmatpush2.msra.mxu0 0.0
    %987 = vmatprep.subr.mxu0 0.0
    %988 = vmatpush2.msra.mxu0 0.0
    %989 = vmatprep.subr.mxu0 0.0
    %990 = vmatpush2.msra.mxu0 0.0
    %991 = vmatprep.subr.mxu0 0.0
    %992 = vmatpush2.msra.mxu0 0.0
    %993 = vmatprep.mubr.f32.mxu0 0.0
    %994 = vmatmul.mubr.f32.gmra.mxu0 %v927
    %v995 = vpop.f32.mrf.mxu0
    %v996 = vadd.f32 %v924, %v995
    %v997 = vpop.f32.mrf.mxu0
    %998 = vdwg.mxu0
    %v999 = vld [vmem:[%s2] sm:$0xf]
    %vm1000 = vcmask 1043456
    %v1001 = vsel %vm1000, %v996, 0.0
    %v1002 = vrot.slane %v1001, 4
    %v1003 = vadd.f32 %v1001, %v1002
    %v1004 = vrot.slane %v1003, 2
    %v1005 = vadd.f32 %v1003, %v1004
    %v1006 = vrot.slane %v1005, 1
    %v1007 = vadd.f32 %v1005, %v1006
    %v1008 = vrcp.pop 4.0
    %v1009 = vmul.f32 %v1007, %v1008
    %v1010 = vsub.f32 %v996, %v1009
    %v1011 = vmul.f32 %v1010, %v1010
    %v1012 = vsel %vm1000, %v1011, 0.0
    %v1013 = vrot.slane %v1012, 4
    %v1014 = vadd.f32 %v1012, %v1013
    %v1015 = vrot.slane %v1014, 2
    %v1016 = vadd.f32 %v1014, %v1015
    %v1017 = vrot.slane %v1016, 1
    %v1018 = vadd.f32 %v1016, %v1017
    %v1019 = vmul.f32 %v1018, %v1008
    %v1020 = vadd.f32 %v1019, 1e-05
    %v1021 = vrsqrt.pop %v1020
    %v1022 = vmul.f32 %v1010, %v1021
    %1024 = vset.pattern.permute.xlu0 17
    %1025 = vperm.xlu0 %1024, %v999
    %v1026 = vpop.permute.xlu0 %1025
    %v1028 = vmul.f32 %v1022, %v1026
    %1029 = vset.pattern.permute.xlu0 18
    %1030 = vperm.xlu0 %1029, %v999
    %v1031 = vpop.permute.xlu0 %1030
    %v1033 = vadd.f32 %v1028, %v1031
    %v1034 = vmax.f32 %v1033, 0.0
    %v1036 = vrot.slane %v996, 4
    %v1038 = vsel %vm1000, %v1036, 0.0
    %v1039 = vrot.slane %v1038, 4
    %v1040 = vadd.f32 %v1038, %v1039
    %v1041 = vrot.slane %v1040, 2
    %v1042 = vadd.f32 %v1040, %v1041
    %v1043 = vrot.slane %v1042, 1
    %v1044 = vadd.f32 %v1042, %v1043
    %v1045 = vmul.f32 %v1044, %v1008
    %v1046 = vsub.f32 %v996, %v1045
    %v1047 = vmul.f32 %v1046, %v1046
    %v1049 = vrot.slane %v1047, 4
    %v1051 = vsel %vm1000, %v1049, 0.0
    %v1052 = vrot.slane %v1051, 4
    %v1053 = vadd.f32 %v1051, %v1052
    %v1054 = vrot.slane %v1053, 2
    %v1055 = vadd.f32 %v1053, %v1054
    %v1056 = vrot.slane %v1055, 1
    %v1057 = vadd.f32 %v1055, %v1056
    %v1058 = vmul.f32 %v1057, %v1008
    %v1059 = vadd.f32 %v1058, 1e-05
    %v1060 = vrsqrt.pop %v1059
    %v1061 = vmul.f32 %v1046, %v1060
    %1062 = vset.pattern.permute.xlu0 22
    %1063 = vperm.xlu0 %1062, %v999
    %v1064 = vpop.permute.xlu0 %1063
    %v1065 = vrot.slane %v1064, 4
    %v1067 = vmul.f32 %v1061, %v1065
    %1068 = vset.pattern.permute.xlu0 23
    %1069 = vperm.xlu0 %1068, %v999
    %v1070 = vpop.permute.xlu0 %1069
    %v1071 = vrot.slane %v1070, 4
    %v1073 = vadd.f32 %v1067, %v1071
    %s1074 = scalar_lea.vmem %s1, 320
    %v1075 = vld [vmem:[%s1074] sm:$0xf]
    %1076 = vset.pattern.permute.xlu0 19
    %1077 = vperm.xlu0 %1076, %v999
    %v1078 = vpop.permute.xlu0 %1077
    %vm1080 = vcmask 31744
    %v1082 = vsel %vm1080, %v1075, 0
    %v1085 = vsel %vm1000, %v1034, 0
    %1087 = vmatprep.subr.mxu0 0.0
    %1088 = vmatpush1.msra.mxu0 0.0
    %1089 = vmatprep.subr.mxu0 0.0
    %1090 = vmatpush1.msra.mxu0 0.0
    %1091 = vmatprep.subr.mxu0 0.0
    %1092 = vmatpush1.msra.mxu0 0.0
    %1093 = vmatprep.subr.mxu0 0.0
    %1094 = vmatpush1.msra.mxu0 0.0
    %1095 = vmatprep.subr.mxu0 0.0
    %1096 = vmatpush1.msra.mxu0 0.0
    %1097 = vmatprep.subr.mxu0 0.0
    %1098 = vmatpush1.msra.mxu0 0.0
    %1099 = vmatprep.subr.mxu0 0.0
    %1100 = vmatpush1.msra.mxu0 0.0
    %1101 = vmatprep.subr.mxu0 0.0
    %1102 = vmatpush1.msra.mxu0 0.0
    %1103 = vmatprep.subr.mxu0 0.0
    %1104 = vmatpush1.msra.mxu0 0.0
    %1105 = vmatprep.subr.mxu0 0.0
    %1106 = vmatpush1.msra.mxu0 0.0
    %1107 = vmatprep.subr.mxu0 0.0
    %1108 = vmatpush1.msra.mxu0 0.0
    %1109 = vmatprep.subr.mxu0 0.0
    %1110 = vmatpush1.msra.mxu0 0.0
    %1111 = vmatprep.subr.mxu0 0.0
    %1112 = vmatpush1.msra.mxu0 0.0
    %1113 = vmatprep.subr.mxu0 0.0
    %1114 = vmatpush1.msra.mxu0 0.0
    %1115 = vmatprep.subr.mxu0 0.0
    %1116 = vmatpush1.msra.mxu0 0.0
    %1117 = vmatprep.subr.mxu0 0.0
    %1118 = vmatpush1.msra.mxu0 %v1085
    %1119 = vmatprep.subr.mxu0 0.0
    %1120 = vmatpush2.msra.mxu0 0.0
    %1121 = vmatprep.subr.mxu0 0.0
    %1122 = vmatpush2.msra.mxu0 0.0
    %1123 = vmatprep.subr.mxu0 0.0
    %1124 = vmatpush2.msra.mxu0 0.0
    %1125 = vmatprep.subr.mxu0 0.0
    %1126 = vmatpush2.msra.mxu0 0.0
    %1127 = vmatprep.subr.mxu0 0.0
    %1128 = vmatpush2.msra.mxu0 0.0
    %1129 = vmatprep.subr.mxu0 0.0
    %1130 = vmatpush2.msra.mxu0 0.0
    %1131 = vmatprep.subr.mxu0 0.0
    %1132 = vmatpush2.msra.mxu0 0.0
    %1133 = vmatprep.subr.mxu0 0.0
    %1134 = vmatpush2.msra.mxu0 0.0
    %1135 = vmatprep.subr.mxu0 0.0
    %1136 = vmatpush2.msra.mxu0 0.0
    %1137 = vmatprep.subr.mxu0 0.0
    %1138 = vmatpush2.msra.mxu0 0.0
    %1139 = vmatprep.subr.mxu0 0.0
    %1140 = vmatpush2.msra.mxu0 0.0
    %1141 = vmatprep.subr.mxu0 0.0
    %1142 = vmatpush2.msra.mxu0 0.0
    %1143 = vmatprep.subr.mxu0 0.0
    %1144 = vmatpush2.msra.mxu0 0.0
    %1145 = vmatprep.subr.mxu0 0.0
    %1146 = vmatpush2.msra.mxu0 0.0
    %1147 = vmatprep.subr.mxu0 0.0
    %1148 = vmatpush2.msra.mxu0 0.0
    %1149 = vmatprep.subr.mxu0 0.0
    %1150 = vmatpush2.msra.mxu0 0.0
    %1151 = vmatprep.mubr.f32.mxu0 0.0
    %1152 = vmatmul.mubr.f32.gmra.mxu0 %v1082
    %v1153 = vpop.f32.mrf.mxu0
    %v1154 = vadd.f32 %v1078, %v1153
    %v1155 = vpop.f32.mrf.mxu0
    %1156 = vdwg.mxu0
    %v1157 = vsel %vm1000, %v1154, 0.0
    %v1158 = vrot.slane %v1157, 4
    %v1159 = vadd.f32 %v1157, %v1158
    %v1160 = vrot.slane %v1159, 2
    %v1161 = vadd.f32 %v1159, %v1160
    %v1162 = vrot.slane %v1161, 1
    %v1163 = vadd.f32 %v1161, %v1162
    %v1164 = vmul.f32 %v1163, %v1008
    %v1165 = vsub.f32 %v1154, %v1164
    %v1166 = vmul.f32 %v1165, %v1165
    %v1167 = vsel %vm1000, %v1166, 0.0
    %v1168 = vrot.slane %v1167, 4
    %v1169 = vadd.f32 %v1167, %v1168
    %v1170 = vrot.slane %v1169, 2
    %v1171 = vadd.f32 %v1169, %v1170
    %v1172 = vrot.slane %v1171, 1
    %v1173 = vadd.f32 %v1171, %v1172
    %v1174 = vmul.f32 %v1173, %v1008
    %v1175 = vadd.f32 %v1174, 1e-05
    %v1176 = vrsqrt.pop %v1175
    %v1177 = vmul.f32 %v1165, %v1176
    %1178 = vset.pattern.permute.xlu0 20
    %1179 = vperm.xlu0 %1178, %v999
    %v1180 = vpop.permute.xlu0 %1179
    %v1182 = vmul.f32 %v1177, %v1180
    %1183 = vset.pattern.permute.xlu0 21
    %1184 = vperm.xlu0 %1183, %v999
    %v1185 = vpop.permute.xlu0 %1184
    %v1187 = vadd.f32 %v1182, %v1185
    %v1189 = vrot.slane %v1073, 4
    %v1191 = vadd.f32 %v1187, %v1189
    %v1192 = vmax.f32 %v1191, 0.0
    %v1193 = vsel %vm1000, %v1192, 0.0
    %v1194 = vrot.slane %v1193, 4
    %v1195 = vadd.f32 %v1193, %v1194
    %v1196 = vrot.slane %v1195, 2
    %v1197 = vadd.f32 %v1195, %v1196
    %v1198 = vrot.slane %v1197, 1
    %v1199 = vadd.f32 %v1197, %v1198
    %v1200 = vmul.f32 %v1199, %v1008
    %v1201 = vsub.f32 %v1192, %v1200
    %v1202 = vmul.f32 %v1201, %v1201
    %v1203 = vsel %vm1000, %v1202, 0.0
    %v1204 = vrot.slane %v1203, 4
    %v1205 = vadd.f32 %v1203, %v1204
    %v1206 = vrot.slane %v1205, 2
    %v1207 = vadd.f32 %v1205, %v1206
    %v1208 = vrot.slane %v1207, 1
    %v1209 = vadd.f32 %v1207, %v1208
    %v1210 = vmul.f32 %v1209, %v1008
    %v1211 = vadd.f32 %v1210, 1e-05
    %v1212 = vrsqrt.pop %v1211
    %v1213 = vmul.f32 %v1201, %v1212
    %1214 = vset.pattern.permute.xlu0 24
    %1215 = vperm.xlu0 %1214, %v999
    %v1216 = vpop.permute.xlu0 %1215
    %v1218 = vmul.f32 %v1213, %v1216
    %1219 = vset.pattern.permute.xlu0 25
    %1220 = vperm.xlu0 %1219, %v999
    %v1221 = vpop.permute.xlu0 %1220
    %v1223 = vadd.f32 %v1218, %v1221
    %s1224 = scalar_lea.vmem %s1, 384
    %v1225 = vld [vmem:[%s1224] sm:$0xf]
    %1226 = vset.pattern.permute.xlu0 26
    %1227 = vperm.xlu0 %1226, %v999
    %v1228 = vpop.permute.xlu0 %1227
    %v1231 = vsel %vm1080, %v1225, 0
    %v1234 = vsel %vm1000, %v1223, 0
    %1236 = vmatprep.subr.mxu0 0.0
    %1237 = vmatpush1.msra.mxu0 0.0
    %1238 = vmatprep.subr.mxu0 0.0
    %1239 = vmatpush1.msra.mxu0 0.0
    %1240 = vmatprep.subr.mxu0 0.0
    %1241 = vmatpush1.msra.mxu0 0.0
    %1242 = vmatprep.subr.mxu0 0.0
    %1243 = vmatpush1.msra.mxu0 0.0
    %1244 = vmatprep.subr.mxu0 0.0
    %1245 = vmatpush1.msra.mxu0 0.0
    %1246 = vmatprep.subr.mxu0 0.0
    %1247 = vmatpush1.msra.mxu0 0.0
    %1248 = vmatprep.subr.mxu0 0.0
    %1249 = vmatpush1.msra.mxu0 0.0
    %1250 = vmatprep.subr.mxu0 0.0
    %1251 = vmatpush1.msra.mxu0 0.0
    %1252 = vmatprep.subr.mxu0 0.0
    %1253 = vmatpush1.msra.mxu0 0.0
    %1254 = vmatprep.subr.mxu0 0.0
    %1255 = vmatpush1.msra.mxu0 0.0
    %1256 = vmatprep.subr.mxu0 0.0
    %1257 = vmatpush1.msra.mxu0 0.0
    %1258 = vmatprep.subr.mxu0 0.0
    %1259 = vmatpush1.msra.mxu0 0.0
    %1260 = vmatprep.subr.mxu0 0.0
    %1261 = vmatpush1.msra.mxu0 0.0
    %1262 = vmatprep.subr.mxu0 0.0
    %1263 = vmatpush1.msra.mxu0 0.0
    %1264 = vmatprep.subr.mxu0 0.0
    %1265 = vmatpush1.msra.mxu0 0.0
    %1266 = vmatprep.subr.mxu0 0.0
    %1267 = vmatpush1.msra.mxu0 %v1234
    %1268 = vmatprep.subr.mxu0 0.0
    %1269 = vmatpush2.msra.mxu0 0.0
    %1270 = vmatprep.subr.mxu0 0.0
    %1271 = vmatpush2.msra.mxu0 0.0
    %1272 = vmatprep.subr.mxu0 0.0
    %1273 = vmatpush2.msra.mxu0 0.0
    %1274 = vmatprep.subr.mxu0 0.0
    %1275 = vmatpush2.msra.mxu0 0.0
    %1276 = vmatprep.subr.mxu0 0.0
    %1277 = vmatpush2.msra.mxu0 0.0
    %1278 = vmatprep.subr.mxu0 0.0
    %1279 = vmatpush2.msra.mxu0 0.0
    %1280 = vmatprep.subr.mxu0 0.0
    %1281 = vmatpush2.msra.mxu0 0.0
    %1282 = vmatprep.subr.mxu0 0.0
    %1283 = vmatpush2.msra.mxu0 0.0
    %1284 = vmatprep.subr.mxu0 0.0
    %1285 = vmatpush2.msra.mxu0 0.0
    %1286 = vmatprep.subr.mxu0 0.0
    %1287 = vmatpush2.msra.mxu0 0.0
    %1288 = vmatprep.subr.mxu0 0.0
    %1289 = vmatpush2.msra.mxu0 0.0
    %1290 = vmatprep.subr.mxu0 0.0
    %1291 = vmatpush2.msra.mxu0 0.0
    %1292 = vmatprep.subr.mxu0 0.0
    %1293 = vmatpush2.msra.mxu0 0.0
    %1294 = vmatprep.subr.mxu0 0.0
    %1295 = vmatpush2.msra.mxu0 0.0
    %1296 = vmatprep.subr.mxu0 0.0
    %1297 = vmatpush2.msra.mxu0 0.0
    %1298 = vmatprep.subr.mxu0 0.0
    %1299 = vmatpush2.msra.mxu0 0.0
    %1300 = vmatprep.mubr.f32.mxu0 0.0
    %1301 = vmatmul.mubr.f32.gmra.mxu0 %v1231
    %v1302 = vpop.f32.mrf.mxu0
    %v1303 = vadd.f32 %v1228, %v1302
    %v1304 = vpop.f32.mrf.mxu0
    %1305 = vdwg.mxu0
    %v1306 = vtanh.pop %v1303
    %v1307 = vmul.f32 %v1306, 3.1415927
    %v1308 = vmul.f32 %v1307, 0.5
    %v1309 = vand.u32 2147483647, %v1308
    %vm1310 = vcmp.le.f32.partialorder %v1309, 0.7853982
    %vm1311 = vcmp.lt.s32.totalorder %v1308, 0
    %v1312 = vand.u32 %v1308, 2139095040
    %v1313 = vshrl.u32 %v1312, 23
    %v1314 = vsub.s32 %v1313, 127
    %v1315 = vand.u32 2147483647, %v1308
    %v1316 = vand.u32 %v1315, 8388607
    %v1317 = vor.u32 %v1316, 8388608
    %v1318 = vsub.s32 0, %v1317
    %v1319 = vadd.s32 %v1314, 1
    %vm1320 = vcmp.gt.s32.totalorder %v1319, 0
    %v1321 = vsel %vm1320, %v1319, 0
    %v1322 = vshrl.u32 %v1321, 5
    %v1323 = vand.u32 %v1321, 31
    %v1324 = vsub.s32 32, %v1323
    %v1325 = vshrl.u32 683565275, %v1324
    %v1326 = vshll.u32 683565275, %v1323
    %v1327 = vshrl.u32 2475754826, %v1324
    %v1328 = vor.u32 %v1326, %v1327
    %v1329 = vshll.u32 2475754826, %v1323
    %v1330 = vshrl.u32 2131351028, %v1324
    %v1331 = vor.u32 %v1329, %v1330
    %v1332 = vshll.u32 2131351028, %v1323
    %v1333 = vshrl.u32 2102212464, %v1324
    %v1334 = vor.u32 %v1332, %v1333
    %v1335 = vshll.u32 2102212464, %v1323
    %v1336 = vshrl.u32 920167782, %v1324
    %v1337 = vor.u32 %v1335, %v1336
    %v1338 = vshll.u32 920167782, %v1323
    %v1339 = vshrl.u32 1326507024, %v1324
    %v1340 = vor.u32 %v1338, %v1339
    %vm1341 = vcmp.lt.s32.totalorder %v1322, 1
    %vm1342 = vcmp.lt.s32.totalorder %v1322, 2
    %vm1343 = vcmp.lt.s32.totalorder %v1322, 3
    %vm1344 = vcmp.lt.s32.totalorder %v1322, 4
    %v1345 = vsel %vm1341, %v1325, %v1328
    %v1346 = vsel %vm1344, %v1334, 2102212464
    %v1347 = vsel %vm1343, %v1331, %v1346
    %v1348 = vsel %vm1342, %v1345, %v1347
    %v1349 = vsel %vm1341, %v1328, %v1331
    %v1350 = vsel %vm1344, %v1337, 920167782
    %v1351 = vsel %vm1343, %v1334, %v1350
    %v1352 = vsel %vm1342, %v1349, %v1351
    %v1353 = vsel %vm1341, %v1331, %v1334
    %v1354 = vsel %vm1344, %v1340, 1326507024
    %v1355 = vsel %vm1343, %v1337, %v1354
    %v1356 = vsel %vm1342, %v1353, %v1355
    %v1357 = vshll.u32 %v1317, 8
    %v1358 = vmul.u32.u64.compose %v1357, %v1356
    %v1359 = vextract.low.u32 %v1358
    %v1360 = vextract.high.u32 %v1358
    %v1361 = vmul.u32.u64.compose %v1357, %v1352
    %v1362 = vextract.low.u32 %v1361
    %v1363 = vextract.high.u32 %v1361
    %v1364 = vmul.u32 %v1357, %v1348
    %v1365 = vadd.s32 %v1360, %v1362
    %vm1366 = vc.u32 %v1360, %v1362
    %v1367 = vadd.s32 %v1363, 1
    %v1368 = vsel %vm1366, %v1367, %v1363
    %v1369 = vadd.s32 %v1364, %v1368
    %v1370 = vadd.s32 %v1369, 536870912
    %v1371 = vshrl.u32 %v1370, 30
    %v1372 = vshll.u32 %v1371, 30
    %v1373 = vsub.s32 %v1369, %v1372
    %vm1374 = vcmp.lt.s32.totalorder %v1373, 0
    %v1375 = vsub.s32 0, %v1373
    %v1376 = vsel %vm1374, %v1375, %v1373
    %v1377 = vclz %v1376
    %v1378 = vsub.s32 %v1377, 2
    %vm1379 = vcmp.gt.s32.totalorder 0, %v1378
    %v1380 = vsel %vm1379, 0, %v1378
    %v1381 = vsub.s32 32, %v1380
    %v1382 = vshll.u32 %v1373, %v1380
    %v1383 = vshrl.u32 %v1365, %v1381
    %v1384 = vor.u32 %v1382, %v1383
    %v1385 = vsub.s32 4294967266, %v1380
    %v1386 = vadd.s32 %v1385, 127
    %v1387 = vshll.u32 %v1386, 23
    %v1388 = vor.u32 4788187, %v1387
    %v1389 = vand.u32 2147483647, %v1388
    %v1391 = vcvt.s32.f32 %v1384
    %v1392 = vmul.f32 %v1391, %v1389
    %v1393 = vxor.u32 %v1392, 2147483648
    %v1394 = vsel %vm1311, %v1393, %v1392
    %v1395 = vsub.s32 4, %v1371
    %v1396 = vsel %vm1311, %v1395, %v1371
    %v1397 = vsel %vm1310, %v1308, %v1394
    %v1398 = vsel %vm1310, 0, %v1396
    %v1399 = vcosq.f32.pop %v1397
    %v1400 = vsinq.f32.pop %v1397
    %vm1401 = vweird.f32 %v1308
    %v1402 = vand.u32 %v1398, 3
    %vm1403 = vcmp.lt.s32.totalorder %v1402, 2
    %vm1404 = vcmp.eq.s32.totalorder %v1402, 0
    %v1405 = vxor.u32 %v1400, 2147483648
    %v1406 = vsel %vm1404, %v1399, %v1405
    %vm1407 = vcmp.eq.s32.totalorder %v1402, 2
    %v1408 = vxor.u32 %v1399, 2147483648
    %v1409 = vsel %vm1407, %v1408, %v1400
    %v1410 = vsel %vm1403, %v1406, %v1409
    %v1411 = vsel %vm1401, nan, %v1410
    %v1412 = vand.u32 2147483647, %v1308
    %vm1413 = vcmp.le.f32.partialorder %v1412, 0.7853982
    %vm1414 = vcmp.lt.s32.totalorder %v1308, 0
    %v1415 = vand.u32 %v1308, 2139095040
    %v1416 = vshrl.u32 %v1415, 23
    %v1417 = vsub.s32 %v1416, 127
    %v1418 = vand.u32 2147483647, %v1308
    %v1419 = vand.u32 %v1418, 8388607
    %v1420 = vor.u32 %v1419, 8388608
    %v1421 = vsub.s32 0, %v1420
    %v1422 = vadd.s32 %v1417, 1
    %vm1423 = vcmp.gt.s32.totalorder %v1422, 0
    %v1424 = vsel %vm1423, %v1422, 0
    %v1425 = vshrl.u32 %v1424, 5
    %v1426 = vand.u32 %v1424, 31
    %v1427 = vsub.s32 32, %v1426
    %v1428 = vshrl.u32 683565275, %v1427
    %v1429 = vshll.u32 683565275, %v1426
    %v1430 = vshrl.u32 2475754826, %v1427
    %v1431 = vor.u32 %v1429, %v1430
    %v1432 = vshll.u32 2475754826, %v1426
    %v1433 = vshrl.u32 2131351028, %v1427
    %v1434 = vor.u32 %v1432, %v1433
    %v1435 = vshll.u32 2131351028, %v1426
    %v1436 = vshrl.u32 2102212464, %v1427
    %v1437 = vor.u32 %v1435, %v1436
    %v1438 = vshll.u32 2102212464, %v1426
    %v1439 = vshrl.u32 920167782, %v1427
    %v1440 = vor.u32 %v1438, %v1439
    %v1441 = vshll.u32 920167782, %v1426
    %v1442 = vshrl.u32 1326507024, %v1427
    %v1443 = vor.u32 %v1441, %v1442
    %vm1444 = vcmp.lt.s32.totalorder %v1425, 1
    %vm1445 = vcmp.lt.s32.totalorder %v1425, 2
    %vm1446 = vcmp.lt.s32.totalorder %v1425, 3
    %vm1447 = vcmp.lt.s32.totalorder %v1425, 4
    %v1448 = vsel %vm1444, %v1428, %v1431
    %v1449 = vsel %vm1447, %v1437, 2102212464
    %v1450 = vsel %vm1446, %v1434, %v1449
    %v1451 = vsel %vm1445, %v1448, %v1450
    %v1452 = vsel %vm1444, %v1431, %v1434
    %v1453 = vsel %vm1447, %v1440, 920167782
    %v1454 = vsel %vm1446, %v1437, %v1453
    %v1455 = vsel %vm1445, %v1452, %v1454
    %v1456 = vsel %vm1444, %v1434, %v1437
    %v1457 = vsel %vm1447, %v1443, 1326507024
    %v1458 = vsel %vm1446, %v1440, %v1457
    %v1459 = vsel %vm1445, %v1456, %v1458
    %v1460 = vshll.u32 %v1420, 8
    %v1461 = vmul.u32.u64.compose %v1460, %v1459
    %v1462 = vextract.low.u32 %v1461
    %v1463 = vextract.high.u32 %v1461
    %v1464 = vmul.u32.u64.compose %v1460, %v1455
    %v1465 = vextract.low.u32 %v1464
    %v1466 = vextract.high.u32 %v1464
    %v1467 = vmul.u32 %v1460, %v1451
    %v1468 = vadd.s32 %v1463, %v1465
    %vm1469 = vc.u32 %v1463, %v1465
    %v1470 = vadd.s32 %v1466, 1
    %v1471 = vsel %vm1469, %v1470, %v1466
    %v1472 = vadd.s32 %v1467, %v1471
    %v1473 = vadd.s32 %v1472, 536870912
    %v1474 = vshrl.u32 %v1473, 30
    %v1475 = vshll.u32 %v1474, 30
    %v1476 = vsub.s32 %v1472, %v1475
    %vm1477 = vcmp.lt.s32.totalorder %v1476, 0
    %v1478 = vsub.s32 0, %v1476
    %v1479 = vsel %vm1477, %v1478, %v1476
    %v1480 = vclz %v1479
    %v1481 = vsub.s32 %v1480, 2
    %vm1482 = vcmp.gt.s32.totalorder 0, %v1481
    %v1483 = vsel %vm1482, 0, %v1481
    %v1484 = vsub.s32 32, %v1483
    %v1485 = vshll.u32 %v1476, %v1483
    %v1486 = vshrl.u32 %v1468, %v1484
    %v1487 = vor.u32 %v1485, %v1486
    %v1488 = vsub.s32 4294967266, %v1483
    %v1489 = vadd.s32 %v1488, 127
    %v1490 = vshll.u32 %v1489, 23
    %v1491 = vor.u32 4788187, %v1490
    %v1492 = vand.u32 2147483647, %v1491
    %v1494 = vcvt.s32.f32 %v1487
    %v1495 = vmul.f32 %v1494, %v1492
    %v1496 = vxor.u32 %v1495, 2147483648
    %v1497 = vsel %vm1414, %v1496, %v1495
    %v1498 = vsub.s32 4, %v1474
    %v1499 = vsel %vm1414, %v1498, %v1474
    %v1500 = vsel %vm1413, %v1308, %v1497
    %v1501 = vsel %vm1413, 0, %v1499
    %v1502 = vcosq.f32.pop %v1500
    %v1503 = vsinq.f32.pop %v1500
    %vm1504 = vweird.f32 %v1308
    %v1505 = vadd.s32 %v1501, 3
    %v1506 = vand.u32 %v1505, 3
    %vm1507 = vcmp.lt.s32.totalorder %v1506, 2
    %vm1508 = vcmp.eq.s32.totalorder %v1506, 0
    %v1509 = vxor.u32 %v1503, 2147483648
    %v1510 = vsel %vm1508, %v1502, %v1509
    %vm1511 = vcmp.eq.s32.totalorder %v1506, 2
    %v1512 = vxor.u32 %v1502, 2147483648
    %v1513 = vsel %vm1511, %v1512, %v1503
    %v1514 = vsel %vm1507, %v1510, %v1513
    %v1515 = vsel %vm1504, nan, %v1514
    %v1516 = vmul.f32 %v1411, %v1411
    %v1517 = vmul.f32 %v1411, %v1515
    %v1518 = vsub.f32 0.0, %v1517
    %v1519 = vmul.f32 %v1515, %v1515
    %v1520 = vsub.f32 1.0, %v683
    %v1521 = vsub.f32 1.0, %v684
    %v1522 = vlaneseq
    %v1523 = vshrl.u32 %v1522, 7
    %v1524 = vsub.s32 0, %v1523
    %v1525 = vrot.slane %v1516, %v1524
    %1527 = vset.pattern.permute.xlu0 29
    %1528 = vperm.xlu0 %1527, %v1520
    %v1529 = vpop.permute.xlu0 %1528
    %1532 = vset.pattern.permute.xlu0 29
    %1533 = vperm.xlu0 %1532, %v1521
    %v1534 = vpop.permute.xlu0 %1533
    %v1536 = vmul.f32 %v1525, %v1529
    %v1537 = vmul.f32 %v1525, %v1534
    %v1538 = vlaneseq
    %v1539 = vshrl.u32 %v1538, 7
    %v1540 = vsub.s32 0, %v1539
    %v1541 = vrot.slane %v1517, %v1540
    %1542 = vset.pattern.permute.xlu0 29
    %1543 = vperm.xlu0 %1542, %v683
    %v1544 = vpop.permute.xlu0 %1543
    %1546 = vset.pattern.permute.xlu0 29
    %1547 = vperm.xlu0 %1546, %v684
    %v1548 = vpop.permute.xlu0 %1547
    %v1550 = vmul.f32 %v1541, %v1544
    %v1551 = vmul.f32 %v1541, %v1548
    %v1552 = vadd.f32 %v1536, %v1550
    %v1553 = vadd.f32 %v1537, %v1551
    %v1554 = vlaneseq
    %v1555 = vshrl.u32 %v1554, 7
    %v1556 = vsub.s32 0, %v1555
    %v1557 = vrot.slane %v1518, %v1556
    %v1558 = vmul.f32 %v1557, %v1529
    %v1559 = vmul.f32 %v1557, %v1534
    %v1560 = vlaneseq
    %v1561 = vshrl.u32 %v1560, 7
    %v1562 = vsub.s32 0, %v1561
    %v1563 = vrot.slane %v1519, %v1562
    %v1564 = vmul.f32 %v1563, %v1544
    %v1565 = vmul.f32 %v1563, %v1548
    %v1566 = vadd.f32 %v1558, %v1564
    %v1567 = vadd.f32 %v1559, %v1565
    %v1568 = vlaneseq
    %v1569 = vshrl.u32 %v1568, 7
    %v1570 = vsub.s32 1, %v1569
    %v1571 = vrot.slane %v1516, %v1570
    %1572 = vset.pattern.permute.xlu0 30
    %1573 = vperm.xlu0 %1572, %v1520
    %v1574 = vpop.permute.xlu0 %1573
    %1576 = vset.pattern.permute.xlu0 30
    %1577 = vperm.xlu0 %1576, %v1521
    %v1578 = vpop.permute.xlu0 %1577
    %v1580 = vmul.f32 %v1571, %v1574
    %v1581 = vmul.f32 %v1571, %v1578
    %v1582 = vlaneseq
    %v1583 = vshrl.u32 %v1582, 7
    %v1584 = vsub.s32 1, %v1583
    %v1585 = vrot.slane %v1517, %v1584
    %1586 = vset.pattern.permute.xlu0 30
    %1587 = vperm.xlu0 %1586, %v683
    %v1588 = vpop.permute.xlu0 %1587
    %1590 = vset.pattern.permute.xlu0 30
    %1591 = vperm.xlu0 %1590, %v684
    %v1592 = vpop.permute.xlu0 %1591
    %v1594 = vmul.f32 %v1585, %v1588
    %v1595 = vmul.f32 %v1585, %v1592
    %v1596 = vadd.f32 %v1580, %v1594
    %v1597 = vadd.f32 %v1581, %v1595
    %v1598 = vlaneseq
    %v1599 = vshrl.u32 %v1598, 7
    %v1600 = vsub.s32 1, %v1599
    %v1601 = vrot.slane %v1518, %v1600
    %v1602 = vmul.f32 %v1601, %v1574
    %v1603 = vmul.f32 %v1601, %v1578
    %v1604 = vlaneseq
    %v1605 = vshrl.u32 %v1604, 7
    %v1606 = vsub.s32 1, %v1605
    %v1607 = vrot.slane %v1519, %v1606
    %v1608 = vmul.f32 %v1607, %v1588
    %v1609 = vmul.f32 %v1607, %v1592
    %v1610 = vadd.f32 %v1602, %v1608
    %v1611 = vadd.f32 %v1603, %v1609
    %v1612 = vmul.f32 %v1552, %v1596
    %v1613 = vmul.f32 %v1553, %v1597
    %v1614 = vmul.f32 %v1566, %v1610
    %v1615 = vmul.f32 %v1567, %v1611
    %v1616 = vsub.f32 %v1612, %v1614
    %v1617 = vsub.f32 %v1613, %v1615
    %v1618 = vmul.f32 %v1552, %v1610
    %v1619 = vmul.f32 %v1553, %v1611
    %v1620 = vmul.f32 %v1566, %v1596
    %v1621 = vmul.f32 %v1567, %v1597
    %v1622 = vadd.f32 %v1618, %v1620
    %v1623 = vadd.f32 %v1619, %v1621
    %v1624 = vlaneseq
    %v1625 = vshrl.u32 %v1624, 7
    %v1626 = vsub.s32 2, %v1625
    %v1627 = vrot.slane %v1516, %v1626
    %1628 = vset.pattern.permute.xlu0 31
    %1629 = vperm.xlu0 %1628, %v1520
    %v1630 = vpop.permute.xlu0 %1629
    %1632 = vset.pattern.permute.xlu0 31
    %1633 = vperm.xlu0 %1632, %v1521
    %v1634 = vpop.permute.xlu0 %1633
    %v1636 = vmul.f32 %v1627, %v1630
    %v1637 = vmul.f32 %v1627, %v1634
    %v1638 = vlaneseq
    %v1639 = vshrl.u32 %v1638, 7
    %v1640 = vsub.s32 2, %v1639
    %v1641 = vrot.slane %v1517, %v1640
    %1642 = vset.pattern.permute.xlu0 31
    %1643 = vperm.xlu0 %1642, %v683
    %v1644 = vpop.permute.xlu0 %1643
    %1646 = vset.pattern.permute.xlu0 31
    %1647 = vperm.xlu0 %1646, %v684
    %v1648 = vpop.permute.xlu0 %1647
    %v1650 = vmul.f32 %v1641, %v1644
    %v1651 = vmul.f32 %v1641, %v1648
    %v1652 = vadd.f32 %v1636, %v1650
    %v1653 = vadd.f32 %v1637, %v1651
    %v1654 = vlaneseq
    %v1655 = vshrl.u32 %v1654, 7
    %v1656 = vsub.s32 2, %v1655
    %v1657 = vrot.slane %v1518, %v1656
    %v1658 = vmul.f32 %v1657, %v1630
    %v1659 = vmul.f32 %v1657, %v1634
    %v1660 = vlaneseq
    %v1661 = vshrl.u32 %v1660, 7
    %v1662 = vsub.s32 2, %v1661
    %v1663 = vrot.slane %v1519, %v1662
    %v1664 = vmul.f32 %v1663, %v1644
    %v1665 = vmul.f32 %v1663, %v1648
    %v1666 = vadd.f32 %v1658, %v1664
    %v1667 = vadd.f32 %v1659, %v1665
    %v1668 = vmul.f32 %v1616, %v1652
    %v1669 = vmul.f32 %v1617, %v1653
    %v1670 = vmul.f32 %v1622, %v1666
    %v1671 = vmul.f32 %v1623, %v1667
    %v1672 = vsub.f32 %v1668, %v1670
    %v1673 = vsub.f32 %v1669, %v1671
    %v1674 = vmul.f32 %v1616, %v1666
    %v1675 = vmul.f32 %v1617, %v1667
    %v1676 = vmul.f32 %v1622, %v1652
    %v1677 = vmul.f32 %v1623, %v1653
    %v1678 = vadd.f32 %v1674, %v1676
    %v1679 = vadd.f32 %v1675, %v1677
    %v1680 = vlaneseq
    %v1681 = vshrl.u32 %v1680, 7
    %v1682 = vsub.s32 3, %v1681
    %v1683 = vrot.slane %v1516, %v1682
    %1684 = vset.pattern.permute.xlu0 32
    %1685 = vperm.xlu0 %1684, %v1520
    %v1686 = vpop.permute.xlu0 %1685
    %1688 = vset.pattern.permute.xlu0 32
    %1689 = vperm.xlu0 %1688, %v1521
    %v1690 = vpop.permute.xlu0 %1689
    %v1692 = vmul.f32 %v1683, %v1686
    %v1693 = vmul.f32 %v1683, %v1690
    %v1694 = vlaneseq
    %v1695 = vshrl.u32 %v1694, 7
    %v1696 = vsub.s32 3, %v1695
    %v1697 = vrot.slane %v1517, %v1696
    %1698 = vset.pattern.permute.xlu0 32
    %1699 = vperm.xlu0 %1698, %v683
    %v1700 = vpop.permute.xlu0 %1699
    %1702 = vset.pattern.permute.xlu0 32
    %1703 = vperm.xlu0 %1702, %v684
    %v1704 = vpop.permute.xlu0 %1703
    %v1706 = vmul.f32 %v1697, %v1700
    %v1707 = vmul.f32 %v1697, %v1704
    %v1708 = vadd.f32 %v1692, %v1706
    %v1709 = vadd.f32 %v1693, %v1707
    %v1710 = vlaneseq
    %v1711 = vshrl.u32 %v1710, 7
    %v1712 = vsub.s32 3, %v1711
    %v1713 = vrot.slane %v1518, %v1712
    %v1714 = vmul.f32 %v1713, %v1686
    %v1715 = vmul.f32 %v1713, %v1690
    %v1716 = vlaneseq
    %v1717 = vshrl.u32 %v1716, 7
    %v1718 = vsub.s32 3, %v1717
    %v1719 = vrot.slane %v1519, %v1718
    %v1720 = vmul.f32 %v1719, %v1700
    %v1721 = vmul.f32 %v1719, %v1704
    %v1722 = vadd.f32 %v1714, %v1720
    %v1723 = vadd.f32 %v1715, %v1721
    %v1724 = vmul.f32 %v1672, %v1708
    %v1725 = vmul.f32 %v1673, %v1709
    %v1726 = vmul.f32 %v1678, %v1722
    %v1727 = vmul.f32 %v1679, %v1723
    %v1728 = vsub.f32 %v1724, %v1726
    %v1729 = vsub.f32 %v1725, %v1727
    %v1730 = vmul.f32 %v1672, %v1722
    %v1731 = vmul.f32 %v1673, %v1723
    %v1732 = vmul.f32 %v1678, %v1708
    %v1733 = vmul.f32 %v1679, %v1709
    %v1734 = vadd.f32 %v1730, %v1732
    %v1735 = vadd.f32 %v1731, %v1733
    %s1736 = scalar_lea.vmem %s1, 448
    %v1737 = vld [vmem:[%s1736] sm:$0xff]
    %v1738 = vld [vmem:[%s1736 + $0x8] sm:$0xff]
    %v1739 = vld [vmem:[%s1736 + $0x10] sm:$0xff]
    %v1740 = vld [vmem:[%s1736 + $0x18] sm:$0xff]
    %v1742 = vsel %vm385, %v1737, 0
    %v1745 = vsel %vm385, %v1738, 0
    %v1748 = vsel %vm385, %v1739, 0
    %v1751 = vsel %vm385, %v1740, 0
    %1753 = vmatprep.subr.mxu0 0.0
    %1754 = vmatpush1.msra.mxu0 0.0
    %1755 = vmatprep.subr.mxu0 0.0
    %1756 = vmatpush1.msra.mxu0 0.0
    %1757 = vmatprep.subr.mxu0 0.0
    %1758 = vmatpush1.msra.mxu0 0.0
    %1759 = vmatprep.subr.mxu0 0.0
    %1760 = vmatpush1.msra.mxu0 0.0
    %1761 = vmatprep.subr.mxu0 0.0
    %1762 = vmatpush1.msra.mxu0 0.0
    %1763 = vmatprep.subr.mxu0 0.0
    %1764 = vmatpush1.msra.mxu0 0.0
    %1765 = vmatprep.subr.mxu0 0.0
    %1766 = vmatpush1.msra.mxu0 0.0
    %1767 = vmatprep.subr.mxu0 0.0
    %1768 = vmatpush1.msra.mxu0 0.0
    %1769 = vmatprep.subr.mxu0 0.0
    %1770 = vmatpush1.msra.mxu0 0.0
    %1771 = vmatprep.subr.mxu0 0.0
    %1772 = vmatpush1.msra.mxu0 0.0
    %1773 = vmatprep.subr.mxu0 0.0
    %1774 = vmatpush1.msra.mxu0 0.0
    %1775 = vmatprep.subr.mxu0 0.0
    %1776 = vmatpush1.msra.mxu0 0.0
    %1777 = vmatprep.subr.mxu0 0.0
    %1778 = vmatpush1.msra.mxu0 %v1735
    %1779 = vmatprep.subr.mxu0 0.0
    %1780 = vmatpush1.msra.mxu0 %v1734
    %1781 = vmatprep.subr.mxu0 0.0
    %1782 = vmatpush1.msra.mxu0 %v1729
    %1783 = vmatprep.subr.mxu0 0.0
    %1784 = vmatpush1.msra.mxu0 %v1728
    %1785 = vmatprep.subr.mxu0 0.0
    %1786 = vmatpush2.msra.mxu0 0.0
    %1787 = vmatprep.subr.mxu0 0.0
    %1788 = vmatpush2.msra.mxu0 0.0
    %1789 = vmatprep.subr.mxu0 0.0
    %1790 = vmatpush2.msra.mxu0 0.0
    %1791 = vmatprep.subr.mxu0 0.0
    %1792 = vmatpush2.msra.mxu0 0.0
    %1793 = vmatprep.subr.mxu0 0.0
    %1794 = vmatpush2.msra.mxu0 0.0
    %1795 = vmatprep.subr.mxu0 0.0
    %1796 = vmatpush2.msra.mxu0 0.0
    %1797 = vmatprep.subr.mxu0 0.0
    %1798 = vmatpush2.msra.mxu0 0.0
    %1799 = vmatprep.subr.mxu0 0.0
    %1800 = vmatpush2.msra.mxu0 0.0
    %1801 = vmatprep.subr.mxu0 0.0
    %1802 = vmatpush2.msra.mxu0 0.0
    %1803 = vmatprep.subr.mxu0 0.0
    %1804 = vmatpush2.msra.mxu0 0.0
    %1805 = vmatprep.subr.mxu0 0.0
    %1806 = vmatpush2.msra.mxu0 0.0
    %1807 = vmatprep.subr.mxu0 0.0
    %1808 = vmatpush2.msra.mxu0 0.0
    %1809 = vmatprep.subr.mxu0 0.0
    %1810 = vmatpush2.msra.mxu0 0.0
    %1811 = vmatprep.subr.mxu0 0.0
    %1812 = vmatpush2.msra.mxu0 0.0
    %1813 = vmatprep.subr.mxu0 0.0
    %1814 = vmatpush2.msra.mxu0 0.0
    %1815 = vmatprep.subr.mxu0 0.0
    %1816 = vmatpush2.msra.mxu0 0.0
    %1817 = vmatprep.mubr.f32.mxu0 0.0
    %1818 = vmatmul.mubr.f32.gmra.mxu0 %v1742
    %v1819 = vpop.f32.mrf.mxu0
    %v1820 = vadd.f32 0.0, %v1819
    %v1821 = vpop.f32.mrf.mxu0
    %1822 = vmatprep.mubr.f32.mxu0 0.0
    %1823 = vmatmul.mubr.f32.gmra.mxu0 %v1745
    %v1824 = vpop.f32.mrf.mxu0
    %v1825 = vadd.f32 0.0, %v1824
    %v1826 = vpop.f32.mrf.mxu0
    %1827 = vmatprep.mubr.f32.mxu0 0.0
    %1828 = vmatmul.mubr.f32.gmra.mxu0 %v1748
    %v1829 = vpop.f32.mrf.mxu0
    %v1830 = vadd.f32 0.0, %v1829
    %v1831 = vpop.f32.mrf.mxu0
    %1832 = vmatprep.mubr.f32.mxu0 0.0
    %1833 = vmatmul.mubr.f32.gmra.mxu0 %v1751
    %v1834 = vpop.f32.mrf.mxu0
    %v1835 = vadd.f32 0.0, %v1834
    %v1836 = vpop.f32.mrf.mxu0
    %1837 = vdwg.mxu0
    %v1838 = vmul.f32 %v1820, %v1820
    %v1839 = vmul.f32 %v1825, %v1825
    %v1840 = vmul.f32 %v1830, %v1830
    %v1841 = vmul.f32 %v1835, %v1835
    %v1842 = vadd.f32 %v1838, %v1840
    %v1843 = vadd.f32 %v1839, %v1841
    %s1844 = scalar_lea.vmem %s1, 512
    %v1845 = vld [vmem:[%s1844] sm:$0xf]
    %v1847 = vsel %vm73, %v1845, 0
    %1849 = vmatprep.subr.mxu0 0.0
    %1850 = vmatpush1.msra.mxu0 0.0
    %1851 = vmatprep.subr.mxu0 0.0
    %1852 = vmatpush1.msra.mxu0 0.0
    %1853 = vmatprep.subr.mxu0 0.0
    %1854 = vmatpush1.msra.mxu0 0.0
    %1855 = vmatprep.subr.mxu0 0.0
    %1856 = vmatpush1.msra.mxu0 0.0
    %1857 = vmatprep.subr.mxu0 0.0
    %1858 = vmatpush1.msra.mxu0 0.0
    %1859 = vmatprep.subr.mxu0 0.0
    %1860 = vmatpush1.msra.mxu0 0.0
    %1861 = vmatprep.subr.mxu0 0.0
    %1862 = vmatpush1.msra.mxu0 0.0
    %1863 = vmatprep.subr.mxu0 0.0
    %1864 = vmatpush1.msra.mxu0 0.0
    %1865 = vmatprep.subr.mxu0 0.0
    %1866 = vmatpush1.msra.mxu0 0.0
    %1867 = vmatprep.subr.mxu0 0.0
    %1868 = vmatpush1.msra.mxu0 0.0
    %1869 = vmatprep.subr.mxu0 0.0
    %1870 = vmatpush1.msra.mxu0 0.0
    %1871 = vmatprep.subr.mxu0 0.0
    %1872 = vmatpush1.msra.mxu0 0.0
    %1873 = vmatprep.subr.mxu0 0.0
    %1874 = vmatpush1.msra.mxu0 0.0
    %1875 = vmatprep.subr.mxu0 0.0
    %1876 = vmatpush1.msra.mxu0 0.0
    %1877 = vmatprep.subr.mxu0 0.0
    %1878 = vmatpush1.msra.mxu0 %v1843
    %1879 = vmatprep.subr.mxu0 0.0
    %1880 = vmatpush1.msra.mxu0 %v1842
    %1881 = vmatprep.subr.mxu0 0.0
    %1882 = vmatpush2.msra.mxu0 0.0
    %1883 = vmatprep.subr.mxu0 0.0
    %1884 = vmatpush2.msra.mxu0 0.0
    %1885 = vmatprep.subr.mxu0 0.0
    %1886 = vmatpush2.msra.mxu0 0.0
    %1887 = vmatprep.subr.mxu0 0.0
    %1888 = vmatpush2.msra.mxu0 0.0
    %1889 = vmatprep.subr.mxu0 0.0
    %1890 = vmatpush2.msra.mxu0 0.0
    %1891 = vmatprep.subr.mxu0 0.0
    %1892 = vmatpush2.msra.mxu0 0.0
    %1893 = vmatprep.subr.mxu0 0.0
    %1894 = vmatpush2.msra.mxu0 0.0
    %1895 = vmatprep.subr.mxu0 0.0
    %1896 = vmatpush2.msra.mxu0 0.0
    %1897 = vmatprep.subr.mxu0 0.0
    %1898 = vmatpush2.msra.mxu0 0.0
    %1899 = vmatprep.subr.mxu0 0.0
    %1900 = vmatpush2.msra.mxu0 0.0
    %1901 = vmatprep.subr.mxu0 0.0
    %1902 = vmatpush2.msra.mxu0 0.0
    %1903 = vmatprep.subr.mxu0 0.0
    %1904 = vmatpush2.msra.mxu0 0.0
    %1905 = vmatprep.subr.mxu0 0.0
    %1906 = vmatpush2.msra.mxu0 0.0
    %1907 = vmatprep.subr.mxu0 0.0
    %1908 = vmatpush2.msra.mxu0 0.0
    %1909 = vmatprep.subr.mxu0 0.0
    %1910 = vmatpush2.msra.mxu0 0.0
    %1911 = vmatprep.subr.mxu0 0.0
    %1912 = vmatpush2.msra.mxu0 0.0
    %1913 = vmatprep.mubr.f32.mxu0 0.0
    %1914 = vmatmul.mubr.f32.gmra.mxu0 %v1847
    %v1915 = vpop.f32.mrf.mxu0
    %v1916 = vadd.f32 0.0, %v1915
    %v1917 = vpop.f32.mrf.mxu0
    %1918 = vdwg.mxu0
    %v1919 = vsel %vm1000, %v1916, 0.0
    %v1920 = vrot.slane %v1919, 4
    %v1921 = vadd.f32 %v1919, %v1920
    %v1922 = vrot.slane %v1921, 2
    %v1923 = vadd.f32 %v1921, %v1922
    %v1924 = vrot.slane %v1923, 1
    %v1925 = vadd.f32 %v1923, %v1924
    %v1926 = vmul.f32 %v1925, %v1008
    %v1927 = vsub.f32 %v1916, %v1926
    %v1928 = vmul.f32 %v1927, %v1927
    %v1929 = vsel %vm1000, %v1928, 0.0
    %v1930 = vrot.slane %v1929, 4
    %v1931 = vadd.f32 %v1929, %v1930
    %v1932 = vrot.slane %v1931, 2
    %v1933 = vadd.f32 %v1931, %v1932
    %v1934 = vrot.slane %v1933, 1
    %v1935 = vadd.f32 %v1933, %v1934
    %v1936 = vmul.f32 %v1935, %v1008
    %v1937 = vadd.f32 %v1936, 1e-05
    %v1938 = vrsqrt.pop %v1937
    %v1939 = vmul.f32 %v1927, %v1938
    %v1940 = vmul.f32 %v1939, %v1216
    %v1941 = vadd.f32 %v1940, %v1221
    %v1942 = vld [vmem:[%s2] sm:$0x1]
    %1943 = vset.pattern.permute.xlu0 27
    %1944 = vperm.xlu0 %1943, %v999
    %v1945 = vpop.permute.xlu0 %1944
    %v1947 = vmul.f32 %v1945, %v1941
    %v1948 = vsel %vm1000, %v1947, 0.0
    %v1949 = vrot.slane %v1948, 4
    %v1950 = vadd.f32 %v1948, %v1949
    %v1951 = vrot.slane %v1950, 2
    %v1952 = vadd.f32 %v1950, %v1951
    %v1953 = vrot.slane %v1952, 1
    %v1954 = vadd.f32 %v1952, %v1953
    %1956 = vset.pattern.permute.xlu0 28
    %1957 = vperm.xlu0 %1956, %v1942
    %v1958 = vpop.permute.xlu0 %1957
    %v1960 = vadd.f32 %v1954, %v1958
    %v1961 = vsub.f32 0.0, %v1960
    %v1962 = vmul.f32 %v1961, 1.442695
    %v1963 = vpow.pop %v1962
    %v1964 = vadd.f32 %v1963, 1.0
    %v1965 = vrcp.pop %v1964
    %v1966 = vmul.f32 1.0, %v1965
    %1967 = vst [vmem:[#allocation2] sm:$0x1] %v1966
    // Predicated region
    $region14: #{tpu_custom_call.1} parent=1 // pred_check
      _
    $region15: #{tpu_custom_call.1} parent=1 // pred_check_branch
      %1969 = sbr.rel (0) target = $region17
    $region16: #{tpu_custom_call.1} parent=1 // pred_region
      %s1971 = ssub.s32 16, 16
      %1972 = vsyncadd [#allocation3], %s1971
      %s1974 = sshll.u32 [#allocation2], 4
      %s1975 = int_to_ptr.vmem [resolvable:$true] %s1974
      %1977 = dma.vmem_to_hbm [thread:$0]  %s1975, 16, %s3, [#allocation3]
    $region17: #{tpu_custom_call.1} parent=1 // pred_fallthru
      _
    // Predicated region
    $region18: #{tpu_custom_call.1} parent=1 // pred_check
      _
    $region19: #{tpu_custom_call.1} parent=1 // pred_check_branch
      %1979 = sbr.rel (0) target = $region21
    $region20: #{tpu_custom_call.1} parent=1 // pred_region
      %1980 = dma.done [#allocation3], 16
    $region21: #{tpu_custom_call.1} parent=1 // pred_fallthru
      _
    %1981 = vsyncpa [#allocation3], 1

</llo_original>
